<compile_context>
chip_gen: v7x
topology: tpu7x:2x2x1
jax: 0.10.0
libtpu: 0.0.40
codegen_flags: <defaults>
</compile_context>

<pallas_src>
import jax
import jax.numpy as jnp
import numpy as np
from jax.experimental import pallas as pl
from jax.experimental.pallas import tpu as pltpu

# ----------------------------- problem sizes --------------------------------
TGT_LEN = 8
SRC_LEN = 12
BATCH = 2
EMB_DIM = 16
HIDDEN = 32
VOCAB = 50


# ============ fused kernel: Embedding + LSTM + GlobalAttention ==============
def fused_decoder_kernel(tgt_ref, lens_ref, h0_ref, c0_ref, mem_ref,
                         emb_tab_ref, wih_ref, whh_ref, bias_ref,
                         wa_ref, woc_ref, woh_ref,
                         dec_ref, attn_ref, hT_ref, cT_ref):
    TB = tgt_ref.shape[0]                         # tgt ids, flattened (T*B, 1)
    V, E = emb_tab_ref.shape
    B, H = h0_ref.shape
    S = mem_ref.shape[0]
    T = TB // B

    # ---- in-kernel embedding lookup: one-hot matmul (no wrapper gather) -----
    ids = tgt_ref[...]                                               # (T*B, 1)
    onehot = (jax.lax.broadcasted_iota(jnp.int32, (TB, V), 1)
              == ids).astype(jnp.float32)                            # (T*B, V)
    emb = jnp.dot(onehot, emb_tab_ref[...],
                  preferred_element_type=jnp.float32)                # (T*B, E)

    # ---- hoisted input projection (time-major, gate order [i, f, o, g]) -----
    gates_x = (jnp.dot(emb, wih_ref[...], preferred_element_type=jnp.float32)
               + bias_ref[...]).reshape(T, B, 4 * H)                 # (T,B,4H)

    # ---- recurrence: state and per-step outputs stay in vregs ---------------
    w_hh = whh_ref[...]
    h = h0_ref[...]                                                  # (B, H)
    c = c0_ref[...]                                                  # (B, H)
    hs = []
    for t in range(T):
        g = gates_x[t] + jnp.dot(h, w_hh, preferred_element_type=jnp.float32)
        act = jax.nn.sigmoid(g[:, :3 * H])        # ONE sigmoid push: i, f, o
        i_g = act[:, 0 * H:1 * H]
        f_g = act[:, 1 * H:2 * H]
        o_g = act[:, 2 * H:3 * H]
        g_g = jnp.tanh(g[:, 3 * H:4 * H])         # ONE tanh push: g
        c = f_g * c + i_g * g_g
        h = o_g * jnp.tanh(c)
        hs.append(h)                              # vreg-resident, no scratch
    hT_ref[...] = h                               # final states written once
    cT_ref[...] = c

    # ---- GlobalAttention('general'), time-major --------------------------- -
    h_tbh = jnp.stack(hs, axis=0)                                    # (T,B,H)
    # W_a applied to all T*B rows at once
    wh = jnp.dot(h_tbh.reshape(TB, H), wa_ref[...],
                 preferred_element_type=jnp.float32).reshape(T, B, H)

    mem = mem_ref[...]                                               # (S,B,H)
    w_oc = woc_ref[...]
    w_oh = woh_ref[...]
    for b in range(B):                            # B=2, static unroll
        mem_b = mem[:, b, :]                                         # (S, H)
        # score(h_t, h_s) = (h_t W_a) . h_s ; contract last axes (no .T to MXU)
        scores = jnp.einsum('th,sh->ts', wh[:, b, :], mem_b,
                            preferred_element_type=jnp.float32)      # (T, S)
        # length mask built in-kernel from SMEM lengths, applied additively
        neg = (jax.lax.broadcasted_iota(jnp.int32, (1, S), 1)
               >= lens_ref[b]).astype(jnp.float32) * jnp.float32(-1e30)
        scores = scores + neg

        # softmax over src_len (attn_func='softmax')
        m = jnp.max(scores, axis=-1, keepdims=True)
        e = jnp.exp(scores - m)
        align = e * pl.reciprocal(jnp.sum(e, axis=-1, keepdims=True),
                                  approx=False)                      # (T, S)

        ctx = jnp.dot(align, mem_b, preferred_element_type=jnp.float32)  # (T,H)
        # linear_out(concat([ctx, h])) with no bias, then tanh
        attn_h = jnp.tanh(
            jnp.dot(ctx, w_oc, preferred_element_type=jnp.float32)
            + jnp.dot(h_tbh[:, b, :], w_oh,
                      preferred_element_type=jnp.float32))           # (T, H)

        dec_ref[:, b:b + 1, :] = attn_h[:, None, :]
        attn_ref[:, b:b + 1, :] = align[:, None, :]


def run_fused_decoder(tgt_tb, lens_b, h0, c0, mem_sbh,
                      emb_table, w_ih, w_hh, bias, w_a, w_out_c, w_out_h):
    T, B = tgt_tb.shape
    H = h0.shape[-1]
    S = mem_sbh.shape[0]
    vmem = pl.BlockSpec(memory_space=pltpu.MemorySpace.VMEM)
    smem = pl.BlockSpec(memory_space=pltpu.MemorySpace.SMEM)
    # (T,B) -> (T*B,1) is a layout-compatible (free) reshape in the wrapper
    tgt_flat = tgt_tb.reshape(T * B, 1)
    return pl.pallas_call(
        fused_decoder_kernel,
        out_shape=(
            jax.ShapeDtypeStruct((T, B, H), jnp.float32),   # dec_outs (time-major)
            jax.ShapeDtypeStruct((T, B, S), jnp.float32),   # attn     (time-major)
            jax.ShapeDtypeStruct((B, H), jnp.float32),      # h_T
            jax.ShapeDtypeStruct((B, H), jnp.float32),      # c_T
        ),
        # no grid: single invocation, whole working set (<100 KiB) in VMEM
        in_specs=[vmem, smem, vmem, vmem, vmem,
                  vmem, vmem, vmem, vmem, vmem, vmem, vmem],
        out_specs=(vmem, vmem, vmem, vmem),
    )(tgt_flat, lens_b, h0, c0, mem_sbh,
      emb_table, w_ih, w_hh, bias, w_a, w_out_c, w_out_h)


# ======================= decoder forward (wrapper) ==========================
def rnn_decoder_forward(kernel_params, tgt, memory_bank, memory_lengths, state):
    """tgt: (T, B) int32; memory_bank: (S, B, H); memory_lengths: (B,) int32.

    `kernel_params` must carry gate columns already reordered to [i, f, o, g]
    (done once at parameter-load time, see prepare_kernel_params).
    No transposes / gathers / mask ops remain in this wrapper.
    """
    h0, c0 = state["hidden"]                                        # each (B, H)
    dec_outs, attn, hT, cT = run_fused_decoder(
        tgt, memory_lengths, h0, c0, memory_bank,
        kernel_params["emb_table"], kernel_params["w_ih"],
        kernel_params["w_hh"], kernel_params["b"],
        kernel_params["w_a"], kernel_params["w_out_c"], kernel_params["w_out_h"])

    attns = {"std": attn}                                           # (T, B, S)
    # dropout p=0.0 -> identity
    new_state = {"hidden": (hT, cT),
                 "input_feed": dec_outs[-1][None],
                 "coverage": None}
    return dec_outs, attns, new_state


def _reorder_gate_cols(w):
    """Gate column blocks [i, f, g, o] -> [i, f, o, g]. Done ONCE at load time."""
    H = w.shape[-1] // 4
    return jnp.concatenate([w[..., :2 * H], w[..., 3 * H:], w[..., 2 * H:3 * H]],
                           axis=-1)


def prepare_kernel_params(params):
    kp = dict(params)
    for name in ("w_ih", "w_hh", "b"):
        kp[name] = _reorder_gate_cols(params[name])
    return kp


# =============================== reference ==================================
def reference_forward(params, tgt, memory_bank, memory_lengths, state):
    emb = jnp.take(params["emb_table"], tgt, axis=0)
    h0, c0 = state["hidden"]
    H = HIDDEN

    def step(carry, x):
        h, c = carry
        gates = x @ params["w_ih"] + h @ params["w_hh"] + params["b"][0]
        i = jax.nn.sigmoid(gates[:, 0 * H:1 * H])
        f = jax.nn.sigmoid(gates[:, 1 * H:2 * H])
        g = jnp.tanh(gates[:, 2 * H:3 * H])
        o = jax.nn.sigmoid(gates[:, 3 * H:4 * H])
        c_new = f * c + i * g
        h_new = o * jnp.tanh(c_new)
        return (h_new, c_new), h_new

    (_, _), rnn_out = jax.lax.scan(step, (h0, c0), emb)            # (T, B, H)

    h_btH = jnp.transpose(rnn_out, (1, 0, 2))
    mem_bsH = jnp.transpose(memory_bank, (1, 0, 2))
    scores = jnp.einsum("bth,hk,bsk->bts", h_btH, params["w_a"], mem_bsH)
    src_idx = jnp.arange(memory_bank.shape[0])[None, None, :]
    scores = jnp.where(src_idx < memory_lengths[:, None, None], scores, -jnp.inf)
    align = jax.nn.softmax(scores, axis=-1)
    ctx = jnp.einsum("bts,bsh->bth", align, mem_bsH)
    out = jnp.tanh(ctx @ params["w_out_c"] + h_btH @ params["w_out_h"])
    return jnp.transpose(out, (1, 0, 2)), jnp.transpose(align, (1, 0, 2))


# ================================== main ====================================
if __name__ == "__main__":
    key = jax.random.PRNGKey(0)
    ks = jax.random.split(key, 10)

    # canonical (PyTorch-style [i, f, g, o]) parameters — used by the reference
    params = {
        "emb_table": 0.1 * jax.random.normal(ks[0], (VOCAB, EMB_DIM), jnp.float32),
        "w_ih": 0.1 * jax.random.normal(ks[1], (EMB_DIM, 4 * HIDDEN), jnp.float32),
        "w_hh": 0.1 * jax.random.normal(ks[2], (HIDDEN, 4 * HIDDEN), jnp.float32),
        "b":    0.1 * jax.random.normal(ks[3], (1, 4 * HIDDEN), jnp.float32),
        "w_a":  0.1 * jax.random.normal(ks[4], (HIDDEN, HIDDEN), jnp.float32),
        "w_out_c": 0.1 * jax.random.normal(ks[5], (HIDDEN, HIDDEN), jnp.float32),
        "w_out_h": 0.1 * jax.random.normal(ks[6], (HIDDEN, HIDDEN), jnp.float32),
    }
    # one-time gate-column reorder for the kernel (off the forward path)
    kernel_params = prepare_kernel_params(params)

    tgt = jax.random.randint(ks[7], (TGT_LEN, BATCH), 0, VOCAB, jnp.int32)
    memory_bank = jax.random.normal(ks[8], (SRC_LEN, BATCH, HIDDEN), jnp.float32)
    memory_lengths = jnp.array([SRC_LEN, SRC_LEN - 3], dtype=jnp.int32)

    # init_state: encoder_final -> (h0, c0); bidirectional_encoder=False
    enc_h = 0.1 * jax.random.normal(ks[9], (BATCH, HIDDEN), jnp.float32)
    enc_c = jnp.zeros((BATCH, HIDDEN), jnp.float32)
    state = {"hidden": (enc_h, enc_c),
             "input_feed": jnp.zeros((1, BATCH, HIDDEN), jnp.float32),
             "coverage": None}

    dec_outs, attns, new_state = rnn_decoder_forward(
        kernel_params, tgt, memory_bank, memory_lengths, state)
    jax.block_until_ready((dec_outs, attns["std"],
                           new_state["hidden"][0], new_state["hidden"][1]))

    ref_outs, ref_attn = reference_forward(
        params, tgt, memory_bank, memory_lengths, state)

    np.testing.assert_allclose(np.asarray(dec_outs), np.asarray(ref_outs),
                               rtol=1e-5, atol=1e-5)
    np.testing.assert_allclose(np.asarray(attns["std"]), np.asarray(ref_attn),
                               rtol=1e-5, atol=1e-5)

    print("KERNEL_OK")
</pallas_src>

<mosaic_0001>
module attributes {stable_mosaic.version = 11 : i64} {
  func.func @fused_decoder_kernel(%arg0: memref<16x1xi32, #tpu.memory_space<vmem>>, %arg1: memref<2xi32, #tpu.memory_space<smem>>, %arg2: memref<2x32xf32, #tpu.memory_space<vmem>>, %arg3: memref<2x32xf32, #tpu.memory_space<vmem>>, %arg4: memref<12x2x32xf32, #tpu.memory_space<vmem>>, %arg5: memref<50x16xf32, #tpu.memory_space<vmem>>, %arg6: memref<16x128xf32, #tpu.memory_space<vmem>>, %arg7: memref<32x128xf32, #tpu.memory_space<vmem>>, %arg8: memref<1x128xf32, #tpu.memory_space<vmem>>, %arg9: memref<32x32xf32, #tpu.memory_space<vmem>>, %arg10: memref<32x32xf32, #tpu.memory_space<vmem>>, %arg11: memref<32x32xf32, #tpu.memory_space<vmem>>, %arg12: memref<8x2x32xf32, #tpu.memory_space<vmem>>, %arg13: memref<8x2x12xf32, #tpu.memory_space<vmem>>, %arg14: memref<2x32xf32, #tpu.memory_space<vmem>>, %arg15: memref<2x32xf32, #tpu.memory_space<vmem>>) attributes {dimension_semantics = [], scalar_prefetch = 0 : i64, scratch_operands = 0 : i64, tpu.core_type = #tpu.core_type<tc>} {
    %c0 = arith.constant 0 : index
    %c0_0 = arith.constant 0 : index
    %0 = vector.load %arg0[%c0, %c0_0] : memref<16x1xi32, #tpu.memory_space<vmem>>, vector<16x1xi32>
    %1 = tpu.iota {dimensions = array<i32: 1>} : vector<16x50xi32>
    %2 = vector.broadcast %0 : vector<16x1xi32> to vector<16x50xi32>
    %3 = arith.cmpi eq, %1, %2 : vector<16x50xi32>
    %4 = arith.extui %3 : vector<16x50xi1> to vector<16x50xi32>
    %5 = arith.sitofp %4 : vector<16x50xi32> to vector<16x50xf32>
    %c0_1 = arith.constant 0 : index
    %c0_2 = arith.constant 0 : index
    %6 = vector.load %arg5[%c0_1, %c0_2] : memref<50x16xf32, #tpu.memory_space<vmem>>, vector<50x16xf32>
    %cst = arith.constant dense<0.000000e+00> : vector<16x16xf32>
    %7 = tpu.matmul %5, %6, %cst {dimension_numbers = #tpu.dot_dimension_numbers<[1], [0], [0], [1], [0, 0, 1, 1], [], []>} : vector<16x50xf32>, vector<50x16xf32>, vector<16x16xf32> -> vector<16x16xf32>
    %c0_3 = arith.constant 0 : index
    %c0_4 = arith.constant 0 : index
    %8 = vector.load %arg6[%c0_3, %c0_4] : memref<16x128xf32, #tpu.memory_space<vmem>>, vector<16x128xf32>
    %cst_5 = arith.constant dense<0.000000e+00> : vector<16x128xf32>
    %9 = tpu.matmul %7, %8, %cst_5 {dimension_numbers = #tpu.dot_dimension_numbers<[1], [0], [0], [1], [0, 0, 1, 1], [], []>} : vector<16x16xf32>, vector<16x128xf32>, vector<16x128xf32> -> vector<16x128xf32>
    %c0_6 = arith.constant 0 : index
    %c0_7 = arith.constant 0 : index
    %10 = vector.load %arg8[%c0_6, %c0_7] : memref<1x128xf32, #tpu.memory_space<vmem>>, vector<1x128xf32>
    %11 = vector.broadcast %10 : vector<1x128xf32> to vector<16x128xf32>
    %12 = arith.addf %9, %11 : vector<16x128xf32>
    %13 = vector.shape_cast %12 : vector<16x128xf32> to vector<8x2x128xf32>
    %c0_8 = arith.constant 0 : index
    %c0_9 = arith.constant 0 : index
    %14 = vector.load %arg7[%c0_8, %c0_9] : memref<32x128xf32, #tpu.memory_space<vmem>>, vector<32x128xf32>
    %c0_10 = arith.constant 0 : index
    %c0_11 = arith.constant 0 : index
    %15 = vector.load %arg2[%c0_10, %c0_11] : memref<2x32xf32, #tpu.memory_space<vmem>>, vector<2x32xf32>
    %c0_12 = arith.constant 0 : index
    %c0_13 = arith.constant 0 : index
    %16 = vector.load %arg3[%c0_12, %c0_13] : memref<2x32xf32, #tpu.memory_space<vmem>>, vector<2x32xf32>
    %17 = vector.extract_strided_slice %13 {offsets = [0, 0, 0], sizes = [1, 2, 128], strides = [1, 1, 1]} : vector<8x2x128xf32> to vector<1x2x128xf32>
    %18 = vector.shape_cast %17 : vector<1x2x128xf32> to vector<2x128xf32>
    %cst_14 = arith.constant dense<0.000000e+00> : vector<2x128xf32>
    %19 = tpu.matmul %15, %14, %cst_14 {dimension_numbers = #tpu.dot_dimension_numbers<[1], [0], [0], [1], [0, 0, 1, 1], [], []>} : vector<2x32xf32>, vector<32x128xf32>, vector<2x128xf32> -> vector<2x128xf32>
    %20 = arith.addf %18, %19 : vector<2x128xf32>
    %21 = vector.extract_strided_slice %20 {offsets = [0, 0], sizes = [2, 96], strides = [1, 1]} : vector<2x128xf32> to vector<2x96xf32>
    %22 = arith.negf %21 : vector<2x96xf32>
    %23 = math.exp %22 : vector<2x96xf32>
    %cst_15 = arith.constant 1.000000e+00 : f32
    %24 = vector.broadcast %cst_15 : f32 to vector<2x96xf32>
    %25 = arith.addf %24, %23 : vector<2x96xf32>
    %26 = arith.divf %24, %25 : vector<2x96xf32>
    %27 = vector.extract_strided_slice %26 {offsets = [0, 0], sizes = [2, 32], strides = [1, 1]} : vector<2x96xf32> to vector<2x32xf32>
    %28 = vector.extract_strided_slice %26 {offsets = [0, 32], sizes = [2, 32], strides = [1, 1]} : vector<2x96xf32> to vector<2x32xf32>
    %29 = vector.extract_strided_slice %26 {offsets = [0, 64], sizes = [2, 32], strides = [1, 1]} : vector<2x96xf32> to vector<2x32xf32>
    %30 = vector.extract_strided_slice %20 {offsets = [0, 96], sizes = [2, 32], strides = [1, 1]} : vector<2x128xf32> to vector<2x32xf32>
    %31 = math.tanh %30 : vector<2x32xf32>
    %32 = arith.mulf %28, %16 : vector<2x32xf32>
    %33 = arith.mulf %27, %31 : vector<2x32xf32>
    %34 = arith.addf %32, %33 : vector<2x32xf32>
    %35 = math.tanh %34 : vector<2x32xf32>
    %36 = arith.mulf %29, %35 : vector<2x32xf32>
    %37 = vector.extract_strided_slice %13 {offsets = [1, 0, 0], sizes = [1, 2, 128], strides = [1, 1, 1]} : vector<8x2x128xf32> to vector<1x2x128xf32>
    %38 = vector.shape_cast %37 : vector<1x2x128xf32> to vector<2x128xf32>
    %cst_16 = arith.constant dense<0.000000e+00> : vector<2x128xf32>
    %39 = tpu.matmul %36, %14, %cst_16 {dimension_numbers = #tpu.dot_dimension_numbers<[1], [0], [0], [1], [0, 0, 1, 1], [], []>} : vector<2x32xf32>, vector<32x128xf32>, vector<2x128xf32> -> vector<2x128xf32>
    %40 = arith.addf %38, %39 : vector<2x128xf32>
    %41 = vector.extract_strided_slice %40 {offsets = [0, 0], sizes = [2, 96], strides = [1, 1]} : vector<2x128xf32> to vector<2x96xf32>
    %42 = arith.negf %41 : vector<2x96xf32>
    %43 = math.exp %42 : vector<2x96xf32>
    %cst_17 = arith.constant 1.000000e+00 : f32
    %44 = vector.broadcast %cst_17 : f32 to vector<2x96xf32>
    %45 = arith.addf %44, %43 : vector<2x96xf32>
    %46 = arith.divf %44, %45 : vector<2x96xf32>
    %47 = vector.extract_strided_slice %46 {offsets = [0, 0], sizes = [2, 32], strides = [1, 1]} : vector<2x96xf32> to vector<2x32xf32>
    %48 = vector.extract_strided_slice %46 {offsets = [0, 32], sizes = [2, 32], strides = [1, 1]} : vector<2x96xf32> to vector<2x32xf32>
    %49 = vector.extract_strided_slice %46 {offsets = [0, 64], sizes = [2, 32], strides = [1, 1]} : vector<2x96xf32> to vector<2x32xf32>
    %50 = vector.extract_strided_slice %40 {offsets = [0, 96], sizes = [2, 32], strides = [1, 1]} : vector<2x128xf32> to vector<2x32xf32>
    %51 = math.tanh %50 : vector<2x32xf32>
    %52 = arith.mulf %48, %34 : vector<2x32xf32>
    %53 = arith.mulf %47, %51 : vector<2x32xf32>
    %54 = arith.addf %52, %53 : vector<2x32xf32>
    %55 = math.tanh %54 : vector<2x32xf32>
    %56 = arith.mulf %49, %55 : vector<2x32xf32>
    %57 = vector.extract_strided_slice %13 {offsets = [2, 0, 0], sizes = [1, 2, 128], strides = [1, 1, 1]} : vector<8x2x128xf32> to vector<1x2x128xf32>
    %58 = vector.shape_cast %57 : vector<1x2x128xf32> to vector<2x128xf32>
    %cst_18 = arith.constant dense<0.000000e+00> : vector<2x128xf32>
    %59 = tpu.matmul %56, %14, %cst_18 {dimension_numbers = #tpu.dot_dimension_numbers<[1], [0], [0], [1], [0, 0, 1, 1], [], []>} : vector<2x32xf32>, vector<32x128xf32>, vector<2x128xf32> -> vector<2x128xf32>
    %60 = arith.addf %58, %59 : vector<2x128xf32>
    %61 = vector.extract_strided_slice %60 {offsets = [0, 0], sizes = [2, 96], strides = [1, 1]} : vector<2x128xf32> to vector<2x96xf32>
    %62 = arith.negf %61 : vector<2x96xf32>
    %63 = math.exp %62 : vector<2x96xf32>
    %cst_19 = arith.constant 1.000000e+00 : f32
    %64 = vector.broadcast %cst_19 : f32 to vector<2x96xf32>
    %65 = arith.addf %64, %63 : vector<2x96xf32>
    %66 = arith.divf %64, %65 : vector<2x96xf32>
    %67 = vector.extract_strided_slice %66 {offsets = [0, 0], sizes = [2, 32], strides = [1, 1]} : vector<2x96xf32> to vector<2x32xf32>
    %68 = vector.extract_strided_slice %66 {offsets = [0, 32], sizes = [2, 32], strides = [1, 1]} : vector<2x96xf32> to vector<2x32xf32>
    %69 = vector.extract_strided_slice %66 {offsets = [0, 64], sizes = [2, 32], strides = [1, 1]} : vector<2x96xf32> to vector<2x32xf32>
    %70 = vector.extract_strided_slice %60 {offsets = [0, 96], sizes = [2, 32], strides = [1, 1]} : vector<2x128xf32> to vector<2x32xf32>
    %71 = math.tanh %70 : vector<2x32xf32>
    %72 = arith.mulf %68, %54 : vector<2x32xf32>
    %73 = arith.mulf %67, %71 : vector<2x32xf32>
    %74 = arith.addf %72, %73 : vector<2x32xf32>
    %75 = math.tanh %74 : vector<2x32xf32>
    %76 = arith.mulf %69, %75 : vector<2x32xf32>
    %77 = vector.extract_strided_slice %13 {offsets = [3, 0, 0], sizes = [1, 2, 128], strides = [1, 1, 1]} : vector<8x2x128xf32> to vector<1x2x128xf32>
    %78 = vector.shape_cast %77 : vector<1x2x128xf32> to vector<2x128xf32>
    %cst_20 = arith.constant dense<0.000000e+00> : vector<2x128xf32>
    %79 = tpu.matmul %76, %14, %cst_20 {dimension_numbers = #tpu.dot_dimension_numbers<[1], [0], [0], [1], [0, 0, 1, 1], [], []>} : vector<2x32xf32>, vector<32x128xf32>, vector<2x128xf32> -> vector<2x128xf32>
    %80 = arith.addf %78, %79 : vector<2x128xf32>
    %81 = vector.extract_strided_slice %80 {offsets = [0, 0], sizes = [2, 96], strides = [1, 1]} : vector<2x128xf32> to vector<2x96xf32>
    %82 = arith.negf %81 : vector<2x96xf32>
    %83 = math.exp %82 : vector<2x96xf32>
    %cst_21 = arith.constant 1.000000e+00 : f32
    %84 = vector.broadcast %cst_21 : f32 to vector<2x96xf32>
    %85 = arith.addf %84, %83 : vector<2x96xf32>
    %86 = arith.divf %84, %85 : vector<2x96xf32>
    %87 = vector.extract_strided_slice %86 {offsets = [0, 0], sizes = [2, 32], strides = [1, 1]} : vector<2x96xf32> to vector<2x32xf32>
    %88 = vector.extract_strided_slice %86 {offsets = [0, 32], sizes = [2, 32], strides = [1, 1]} : vector<2x96xf32> to vector<2x32xf32>
    %89 = vector.extract_strided_slice %86 {offsets = [0, 64], sizes = [2, 32], strides = [1, 1]} : vector<2x96xf32> to vector<2x32xf32>
    %90 = vector.extract_strided_slice %80 {offsets = [0, 96], sizes = [2, 32], strides = [1, 1]} : vector<2x128xf32> to vector<2x32xf32>
    %91 = math.tanh %90 : vector<2x32xf32>
    %92 = arith.mulf %88, %74 : vector<2x32xf32>
    %93 = arith.mulf %87, %91 : vector<2x32xf32>
    %94 = arith.addf %92, %93 : vector<2x32xf32>
    %95 = math.tanh %94 : vector<2x32xf32>
    %96 = arith.mulf %89, %95 : vector<2x32xf32>
    %97 = vector.extract_strided_slice %13 {offsets = [4, 0, 0], sizes = [1, 2, 128], strides = [1, 1, 1]} : vector<8x2x128xf32> to vector<1x2x128xf32>
    %98 = vector.shape_cast %97 : vector<1x2x128xf32> to vector<2x128xf32>
    %cst_22 = arith.constant dense<0.000000e+00> : vector<2x128xf32>
    %99 = tpu.matmul %96, %14, %cst_22 {dimension_numbers = #tpu.dot_dimension_numbers<[1], [0], [0], [1], [0, 0, 1, 1], [], []>} : vector<2x32xf32>, vector<32x128xf32>, vector<2x128xf32> -> vector<2x128xf32>
    %100 = arith.addf %98, %99 : vector<2x128xf32>
    %101 = vector.extract_strided_slice %100 {offsets = [0, 0], sizes = [2, 96], strides = [1, 1]} : vector<2x128xf32> to vector<2x96xf32>
    %102 = arith.negf %101 : vector<2x96xf32>
    %103 = math.exp %102 : vector<2x96xf32>
    %cst_23 = arith.constant 1.000000e+00 : f32
    %104 = vector.broadcast %cst_23 : f32 to vector<2x96xf32>
    %105 = arith.addf %104, %103 : vector<2x96xf32>
    %106 = arith.divf %104, %105 : vector<2x96xf32>
    %107 = vector.extract_strided_slice %106 {offsets = [0, 0], sizes = [2, 32], strides = [1, 1]} : vector<2x96xf32> to vector<2x32xf32>
    %108 = vector.extract_strided_slice %106 {offsets = [0, 32], sizes = [2, 32], strides = [1, 1]} : vector<2x96xf32> to vector<2x32xf32>
    %109 = vector.extract_strided_slice %106 {offsets = [0, 64], sizes = [2, 32], strides = [1, 1]} : vector<2x96xf32> to vector<2x32xf32>
    %110 = vector.extract_strided_slice %100 {offsets = [0, 96], sizes = [2, 32], strides = [1, 1]} : vector<2x128xf32> to vector<2x32xf32>
    %111 = math.tanh %110 : vector<2x32xf32>
    %112 = arith.mulf %108, %94 : vector<2x32xf32>
    %113 = arith.mulf %107, %111 : vector<2x32xf32>
    %114 = arith.addf %112, %113 : vector<2x32xf32>
    %115 = math.tanh %114 : vector<2x32xf32>
    %116 = arith.mulf %109, %115 : vector<2x32xf32>
    %117 = vector.extract_strided_slice %13 {offsets = [5, 0, 0], sizes = [1, 2, 128], strides = [1, 1, 1]} : vector<8x2x128xf32> to vector<1x2x128xf32>
    %118 = vector.shape_cast %117 : vector<1x2x128xf32> to vector<2x128xf32>
    %cst_24 = arith.constant dense<0.000000e+00> : vector<2x128xf32>
    %119 = tpu.matmul %116, %14, %cst_24 {dimension_numbers = #tpu.dot_dimension_numbers<[1], [0], [0], [1], [0, 0, 1, 1], [], []>} : vector<2x32xf32>, vector<32x128xf32>, vector<2x128xf32> -> vector<2x128xf32>
    %120 = arith.addf %118, %119 : vector<2x128xf32>
    %121 = vector.extract_strided_slice %120 {offsets = [0, 0], sizes = [2, 96], strides = [1, 1]} : vector<2x128xf32> to vector<2x96xf32>
    %122 = arith.negf %121 : vector<2x96xf32>
    %123 = math.exp %122 : vector<2x96xf32>
    %cst_25 = arith.constant 1.000000e+00 : f32
    %124 = vector.broadcast %cst_25 : f32 to vector<2x96xf32>
    %125 = arith.addf %124, %123 : vector<2x96xf32>
    %126 = arith.divf %124, %125 : vector<2x96xf32>
    %127 = vector.extract_strided_slice %126 {offsets = [0, 0], sizes = [2, 32], strides = [1, 1]} : vector<2x96xf32> to vector<2x32xf32>
    %128 = vector.extract_strided_slice %126 {offsets = [0, 32], sizes = [2, 32], strides = [1, 1]} : vector<2x96xf32> to vector<2x32xf32>
    %129 = vector.extract_strided_slice %126 {offsets = [0, 64], sizes = [2, 32], strides = [1, 1]} : vector<2x96xf32> to vector<2x32xf32>
    %130 = vector.extract_strided_slice %120 {offsets = [0, 96], sizes = [2, 32], strides = [1, 1]} : vector<2x128xf32> to vector<2x32xf32>
    %131 = math.tanh %130 : vector<2x32xf32>
    %132 = arith.mulf %128, %114 : vector<2x32xf32>
    %133 = arith.mulf %127, %131 : vector<2x32xf32>
    %134 = arith.addf %132, %133 : vector<2x32xf32>
    %135 = math.tanh %134 : vector<2x32xf32>
    %136 = arith.mulf %129, %135 : vector<2x32xf32>
    %137 = vector.extract_strided_slice %13 {offsets = [6, 0, 0], sizes = [1, 2, 128], strides = [1, 1, 1]} : vector<8x2x128xf32> to vector<1x2x128xf32>
    %138 = vector.shape_cast %137 : vector<1x2x128xf32> to vector<2x128xf32>
    %cst_26 = arith.constant dense<0.000000e+00> : vector<2x128xf32>
    %139 = tpu.matmul %136, %14, %cst_26 {dimension_numbers = #tpu.dot_dimension_numbers<[1], [0], [0], [1], [0, 0, 1, 1], [], []>} : vector<2x32xf32>, vector<32x128xf32>, vector<2x128xf32> -> vector<2x128xf32>
    %140 = arith.addf %138, %139 : vector<2x128xf32>
    %141 = vector.extract_strided_slice %140 {offsets = [0, 0], sizes = [2, 96], strides = [1, 1]} : vector<2x128xf32> to vector<2x96xf32>
    %142 = arith.negf %141 : vector<2x96xf32>
    %143 = math.exp %142 : vector<2x96xf32>
    %cst_27 = arith.constant 1.000000e+00 : f32
    %144 = vector.broadcast %cst_27 : f32 to vector<2x96xf32>
    %145 = arith.addf %144, %143 : vector<2x96xf32>
    %146 = arith.divf %144, %145 : vector<2x96xf32>
    %147 = vector.extract_strided_slice %146 {offsets = [0, 0], sizes = [2, 32], strides = [1, 1]} : vector<2x96xf32> to vector<2x32xf32>
    %148 = vector.extract_strided_slice %146 {offsets = [0, 32], sizes = [2, 32], strides = [1, 1]} : vector<2x96xf32> to vector<2x32xf32>
    %149 = vector.extract_strided_slice %146 {offsets = [0, 64], sizes = [2, 32], strides = [1, 1]} : vector<2x96xf32> to vector<2x32xf32>
    %150 = vector.extract_strided_slice %140 {offsets = [0, 96], sizes = [2, 32], strides = [1, 1]} : vector<2x128xf32> to vector<2x32xf32>
    %151 = math.tanh %150 : vector<2x32xf32>
    %152 = arith.mulf %148, %134 : vector<2x32xf32>
    %153 = arith.mulf %147, %151 : vector<2x32xf32>
    %154 = arith.addf %152, %153 : vector<2x32xf32>
    %155 = math.tanh %154 : vector<2x32xf32>
    %156 = arith.mulf %149, %155 : vector<2x32xf32>
    %157 = vector.extract_strided_slice %13 {offsets = [7, 0, 0], sizes = [1, 2, 128], strides = [1, 1, 1]} : vector<8x2x128xf32> to vector<1x2x128xf32>
    %158 = vector.shape_cast %157 : vector<1x2x128xf32> to vector<2x128xf32>
    %cst_28 = arith.constant dense<0.000000e+00> : vector<2x128xf32>
    %159 = tpu.matmul %156, %14, %cst_28 {dimension_numbers = #tpu.dot_dimension_numbers<[1], [0], [0], [1], [0, 0, 1, 1], [], []>} : vector<2x32xf32>, vector<32x128xf32>, vector<2x128xf32> -> vector<2x128xf32>
    %160 = arith.addf %158, %159 : vector<2x128xf32>
    %161 = vector.extract_strided_slice %160 {offsets = [0, 0], sizes = [2, 96], strides = [1, 1]} : vector<2x128xf32> to vector<2x96xf32>
    %162 = arith.negf %161 : vector<2x96xf32>
    %163 = math.exp %162 : vector<2x96xf32>
    %cst_29 = arith.constant 1.000000e+00 : f32
    %164 = vector.broadcast %cst_29 : f32 to vector<2x96xf32>
    %165 = arith.addf %164, %163 : vector<2x96xf32>
    %166 = arith.divf %164, %165 : vector<2x96xf32>
    %167 = vector.extract_strided_slice %166 {offsets = [0, 0], sizes = [2, 32], strides = [1, 1]} : vector<2x96xf32> to vector<2x32xf32>
    %168 = vector.extract_strided_slice %166 {offsets = [0, 32], sizes = [2, 32], strides = [1, 1]} : vector<2x96xf32> to vector<2x32xf32>
    %169 = vector.extract_strided_slice %166 {offsets = [0, 64], sizes = [2, 32], strides = [1, 1]} : vector<2x96xf32> to vector<2x32xf32>
    %170 = vector.extract_strided_slice %160 {offsets = [0, 96], sizes = [2, 32], strides = [1, 1]} : vector<2x128xf32> to vector<2x32xf32>
    %171 = math.tanh %170 : vector<2x32xf32>
    %172 = arith.mulf %168, %154 : vector<2x32xf32>
    %173 = arith.mulf %167, %171 : vector<2x32xf32>
    %174 = arith.addf %172, %173 : vector<2x32xf32>
    %175 = math.tanh %174 : vector<2x32xf32>
    %176 = arith.mulf %169, %175 : vector<2x32xf32>
    %c0_30 = arith.constant 0 : index
    %c0_31 = arith.constant 0 : index
    %177 = vector.load %arg14[%c0_30, %c0_31] : memref<2x32xf32, #tpu.memory_space<vmem>>, vector<2x32xf32>
    tpu.vector_store %arg14[%c0_30, %c0_31], %176 {strides = array<i32>} : memref<2x32xf32, #tpu.memory_space<vmem>>, vector<2x32xf32>,
    %c0_32 = arith.constant 0 : index
    %c0_33 = arith.constant 0 : index
    %178 = vector.load %arg15[%c0_32, %c0_33] : memref<2x32xf32, #tpu.memory_space<vmem>>, vector<2x32xf32>
    tpu.vector_store %arg15[%c0_32, %c0_33], %174 {strides = array<i32>} : memref<2x32xf32, #tpu.memory_space<vmem>>, vector<2x32xf32>,
    %179 = vector.shape_cast %36 : vector<2x32xf32> to vector<1x2x32xf32>
    %180 = vector.shape_cast %56 : vector<2x32xf32> to vector<1x2x32xf32>
    %181 = vector.shape_cast %76 : vector<2x32xf32> to vector<1x2x32xf32>
    %182 = vector.shape_cast %96 : vector<2x32xf32> to vector<1x2x32xf32>
    %183 = vector.shape_cast %116 : vector<2x32xf32> to vector<1x2x32xf32>
    %184 = vector.shape_cast %136 : vector<2x32xf32> to vector<1x2x32xf32>
    %185 = vector.shape_cast %156 : vector<2x32xf32> to vector<1x2x32xf32>
    %186 = vector.shape_cast %176 : vector<2x32xf32> to vector<1x2x32xf32>
    %187 = tpu.concatenate %179, %180, %181, %182, %183, %184, %185, %186 in 0 : vector<1x2x32xf32>, vector<1x2x32xf32>, vector<1x2x32xf32>, vector<1x2x32xf32>, vector<1x2x32xf32>, vector<1x2x32xf32>, vector<1x2x32xf32>, vector<1x2x32xf32> -> vector<8x2x32xf32>
    %188 = vector.shape_cast %187 : vector<8x2x32xf32> to vector<16x32xf32>
    %c0_34 = arith.constant 0 : index
    %c0_35 = arith.constant 0 : index
    %189 = vector.load %arg9[%c0_34, %c0_35] : memref<32x32xf32, #tpu.memory_space<vmem>>, vector<32x32xf32>
    %cst_36 = arith.constant dense<0.000000e+00> : vector<16x32xf32>
    %190 = tpu.matmul %188, %189, %cst_36 {dimension_numbers = #tpu.dot_dimension_numbers<[1], [0], [0], [1], [0, 0, 1, 1], [], []>} : vector<16x32xf32>, vector<32x32xf32>, vector<16x32xf32> -> vector<16x32xf32>
    %191 = vector.shape_cast %190 : vector<16x32xf32> to vector<8x2x32xf32>
    %c0_37 = arith.constant 0 : index
    %c0_38 = arith.constant 0 : index
    %c0_39 = arith.constant 0 : index
    %192 = vector.load %arg4[%c0_37, %c0_38, %c0_39] : memref<12x2x32xf32, #tpu.memory_space<vmem>>, vector<12x2x32xf32>
    %c0_40 = arith.constant 0 : index
    %c0_41 = arith.constant 0 : index
    %193 = vector.load %arg10[%c0_40, %c0_41] : memref<32x32xf32, #tpu.memory_space<vmem>>, vector<32x32xf32>
    %c0_42 = arith.constant 0 : index
    %c0_43 = arith.constant 0 : index
    %194 = vector.load %arg11[%c0_42, %c0_43] : memref<32x32xf32, #tpu.memory_space<vmem>>, vector<32x32xf32>
    %195 = vector.extract_strided_slice %192 {offsets = [0, 0, 0], sizes = [12, 1, 32], strides = [1, 1, 1]} : vector<12x2x32xf32> to vector<12x1x32xf32>
    %196 = vector.shape_cast %195 : vector<12x1x32xf32> to vector<12x32xf32>
    %197 = vector.extract_strided_slice %191 {offsets = [0, 0, 0], sizes = [8, 1, 32], strides = [1, 1, 1]} : vector<8x2x32xf32> to vector<8x1x32xf32>
    %198 = vector.shape_cast %197 : vector<8x1x32xf32> to vector<8x32xf32>
    "tpu.trace_start"() <{level = 10 : i32, message = "th,sh->ts"}> : () -> ()
    %cst_44 = arith.constant dense<0.000000e+00> : vector<8x12xf32>
    %199 = tpu.matmul %198, %196, %cst_44 {dimension_numbers = #tpu.dot_dimension_numbers<[1], [1], [0], [0], [0, 0, 1, 0], [], []>} : vector<8x32xf32>, vector<12x32xf32>, vector<8x12xf32> -> vector<8x12xf32>
    "tpu.trace_stop"() : () -> ()
    %200 = tpu.iota {dimensions = array<i32: 1>} : vector<1x12xi32>
    %c0_45 = arith.constant 0 : index
    %201 = memref.load %arg1[%c0_45] : memref<2xi32, #tpu.memory_space<smem>>
    %202 = vector.broadcast %201 : i32 to vector<1x12xi32>
    %203 = arith.cmpi sge, %200, %202 : vector<1x12xi32>
    %204 = arith.extui %203 : vector<1x12xi1> to vector<1x12xi32>
    %205 = arith.sitofp %204 : vector<1x12xi32> to vector<1x12xf32>
    %cst_46 = arith.constant -1.000000e+30 : f32
    %206 = vector.broadcast %cst_46 : f32 to vector<1x12xf32>
    %207 = arith.mulf %205, %206 : vector<1x12xf32>
    %208 = vector.broadcast %207 : vector<1x12xf32> to vector<8x12xf32>
    %209 = arith.addf %199, %208 : vector<8x12xf32>
    %cst_47 = arith.constant dense<0xFF800000> : vector<8xf32>
    %210 = vector.multi_reduction <maximumf>, %209, %cst_47 [1] : vector<8x12xf32> to vector<8xf32>
    %211 = vector.shape_cast %210 : vector<8xf32> to vector<8x1xf32>
    %212 = vector.broadcast %211 : vector<8x1xf32> to vector<8x12xf32>
    %213 = arith.subf %209, %212 : vector<8x12xf32>
    %214 = math.exp %213 : vector<8x12xf32>
    %cst_48 = arith.constant dense<0.000000e+00> : vector<8xf32>
    %215 = vector.multi_reduction <add>, %214, %cst_48 [1] : vector<8x12xf32> to vector<8xf32>
    %216 = vector.shape_cast %215 : vector<8xf32> to vector<8x1xf32>
    %217 = tpu.reciprocal %216 : vector<8x1xf32> -> vector<8x1xf32>
    %218 = vector.broadcast %217 : vector<8x1xf32> to vector<8x12xf32>
    %219 = arith.mulf %214, %218 : vector<8x12xf32>
    %cst_49 = arith.constant dense<0.000000e+00> : vector<8x32xf32>
    %220 = tpu.matmul %219, %196, %cst_49 {dimension_numbers = #tpu.dot_dimension_numbers<[1], [0], [0], [1], [0, 0, 1, 1], [], []>} : vector<8x12xf32>, vector<12x32xf32>, vector<8x32xf32> -> vector<8x32xf32>
    %cst_50 = arith.constant dense<0.000000e+00> : vector<8x32xf32>
    %221 = tpu.matmul %220, %193, %cst_50 {dimension_numbers = #tpu.dot_dimension_numbers<[1], [0], [0], [1], [0, 0, 1, 1], [], []>} : vector<8x32xf32>, vector<32x32xf32>, vector<8x32xf32> -> vector<8x32xf32>
    %222 = vector.extract_strided_slice %187 {offsets = [0, 0, 0], sizes = [8, 1, 32], strides = [1, 1, 1]} : vector<8x2x32xf32> to vector<8x1x32xf32>
    %223 = vector.shape_cast %222 : vector<8x1x32xf32> to vector<8x32xf32>
    %cst_51 = arith.constant dense<0.000000e+00> : vector<8x32xf32>
    %224 = tpu.matmul %223, %194, %cst_51 {dimension_numbers = #tpu.dot_dimension_numbers<[1], [0], [0], [1], [0, 0, 1, 1], [], []>} : vector<8x32xf32>, vector<32x32xf32>, vector<8x32xf32> -> vector<8x32xf32>
    %225 = arith.addf %221, %224 : vector<8x32xf32>
    %226 = math.tanh %225 : vector<8x32xf32>
    %227 = vector.shape_cast %226 : vector<8x32xf32> to vector<8x1x32xf32>
    %c0_52 = arith.constant 0 : index
    %c0_53 = arith.constant 0 : index
    %c0_54 = arith.constant 0 : index
    %228 = vector.load %arg12[%c0_52, %c0_53, %c0_54] : memref<8x2x32xf32, #tpu.memory_space<vmem>>, vector<8x1x32xf32>
    tpu.vector_store %arg12[%c0_52, %c0_53, %c0_54], %227 {strides = array<i32>} : memref<8x2x32xf32, #tpu.memory_space<vmem>>, vector<8x1x32xf32>,
    %229 = vector.shape_cast %219 : vector<8x12xf32> to vector<8x1x12xf32>
    %c0_55 = arith.constant 0 : index
    %c0_56 = arith.constant 0 : index
    %c0_57 = arith.constant 0 : index
    %230 = vector.load %arg13[%c0_55, %c0_56, %c0_57] : memref<8x2x12xf32, #tpu.memory_space<vmem>>, vector<8x1x12xf32>
    tpu.vector_store %arg13[%c0_55, %c0_56, %c0_57], %229 {strides = array<i32>} : memref<8x2x12xf32, #tpu.memory_space<vmem>>, vector<8x1x12xf32>,
    %231 = vector.extract_strided_slice %192 {offsets = [0, 1, 0], sizes = [12, 1, 32], strides = [1, 1, 1]} : vector<12x2x32xf32> to vector<12x1x32xf32>
    %232 = vector.shape_cast %231 : vector<12x1x32xf32> to vector<12x32xf32>
    %233 = vector.extract_strided_slice %191 {offsets = [0, 1, 0], sizes = [8, 1, 32], strides = [1, 1, 1]} : vector<8x2x32xf32> to vector<8x1x32xf32>
    %234 = vector.shape_cast %233 : vector<8x1x32xf32> to vector<8x32xf32>
    "tpu.trace_start"() <{level = 10 : i32, message = "th,sh->ts"}> : () -> ()
    %cst_58 = arith.constant dense<0.000000e+00> : vector<8x12xf32>
    %235 = tpu.matmul %234, %232, %cst_58 {dimension_numbers = #tpu.dot_dimension_numbers<[1], [1], [0], [0], [0, 0, 1, 0], [], []>} : vector<8x32xf32>, vector<12x32xf32>, vector<8x12xf32> -> vector<8x12xf32>
    "tpu.trace_stop"() : () -> ()
    %236 = tpu.iota {dimensions = array<i32: 1>} : vector<1x12xi32>
    %c1 = arith.constant 1 : index
    %237 = memref.load %arg1[%c1] : memref<2xi32, #tpu.memory_space<smem>>
    %238 = vector.broadcast %237 : i32 to vector<1x12xi32>
    %239 = arith.cmpi sge, %236, %238 : vector<1x12xi32>
    %240 = arith.extui %239 : vector<1x12xi1> to vector<1x12xi32>
    %241 = arith.sitofp %240 : vector<1x12xi32> to vector<1x12xf32>
    %cst_59 = arith.constant -1.000000e+30 : f32
    %242 = vector.broadcast %cst_59 : f32 to vector<1x12xf32>
    %243 = arith.mulf %241, %242 : vector<1x12xf32>
    %244 = vector.broadcast %243 : vector<1x12xf32> to vector<8x12xf32>
    %245 = arith.addf %235, %244 : vector<8x12xf32>
    %cst_60 = arith.constant dense<0xFF800000> : vector<8xf32>
    %246 = vector.multi_reduction <maximumf>, %245, %cst_60 [1] : vector<8x12xf32> to vector<8xf32>
    %247 = vector.shape_cast %246 : vector<8xf32> to vector<8x1xf32>
    %248 = vector.broadcast %247 : vector<8x1xf32> to vector<8x12xf32>
    %249 = arith.subf %245, %248 : vector<8x12xf32>
    %250 = math.exp %249 : vector<8x12xf32>
    %cst_61 = arith.constant dense<0.000000e+00> : vector<8xf32>
    %251 = vector.multi_reduction <add>, %250, %cst_61 [1] : vector<8x12xf32> to vector<8xf32>
    %252 = vector.shape_cast %251 : vector<8xf32> to vector<8x1xf32>
    %253 = tpu.reciprocal %252 : vector<8x1xf32> -> vector<8x1xf32>
    %254 = vector.broadcast %253 : vector<8x1xf32> to vector<8x12xf32>
    %255 = arith.mulf %250, %254 : vector<8x12xf32>
    %cst_62 = arith.constant dense<0.000000e+00> : vector<8x32xf32>
    %256 = tpu.matmul %255, %232, %cst_62 {dimension_numbers = #tpu.dot_dimension_numbers<[1], [0], [0], [1], [0, 0, 1, 1], [], []>} : vector<8x12xf32>, vector<12x32xf32>, vector<8x32xf32> -> vector<8x32xf32>
    %cst_63 = arith.constant dense<0.000000e+00> : vector<8x32xf32>
    %257 = tpu.matmul %256, %193, %cst_63 {dimension_numbers = #tpu.dot_dimension_numbers<[1], [0], [0], [1], [0, 0, 1, 1], [], []>} : vector<8x32xf32>, vector<32x32xf32>, vector<8x32xf32> -> vector<8x32xf32>
    %258 = vector.extract_strided_slice %187 {offsets = [0, 1, 0], sizes = [8, 1, 32], strides = [1, 1, 1]} : vector<8x2x32xf32> to vector<8x1x32xf32>
    %259 = vector.shape_cast %258 : vector<8x1x32xf32> to vector<8x32xf32>
    %cst_64 = arith.constant dense<0.000000e+00> : vector<8x32xf32>
    %260 = tpu.matmul %259, %194, %cst_64 {dimension_numbers = #tpu.dot_dimension_numbers<[1], [0], [0], [1], [0, 0, 1, 1], [], []>} : vector<8x32xf32>, vector<32x32xf32>, vector<8x32xf32> -> vector<8x32xf32>
    %261 = arith.addf %257, %260 : vector<8x32xf32>
    %262 = math.tanh %261 : vector<8x32xf32>
    %263 = vector.shape_cast %262 : vector<8x32xf32> to vector<8x1x32xf32>
    %c0_65 = arith.constant 0 : index
    %c1_66 = arith.constant 1 : index
    %c0_67 = arith.constant 0 : index
    %264 = vector.load %arg12[%c0_65, %c1_66, %c0_67] : memref<8x2x32xf32, #tpu.memory_space<vmem>>, vector<8x1x32xf32>
    tpu.vector_store %arg12[%c0_65, %c1_66, %c0_67], %263 {strides = array<i32>} : memref<8x2x32xf32, #tpu.memory_space<vmem>>, vector<8x1x32xf32>,
    %265 = vector.shape_cast %255 : vector<8x12xf32> to vector<8x1x12xf32>
    %c0_68 = arith.constant 0 : index
    %c1_69 = arith.constant 1 : index
    %c0_70 = arith.constant 0 : index
    %266 = vector.load %arg13[%c0_68, %c1_69, %c0_70] : memref<8x2x12xf32, #tpu.memory_space<vmem>>, vector<8x1x12xf32>
    tpu.vector_store %arg13[%c0_68, %c1_69, %c0_70], %265 {strides = array<i32>} : memref<8x2x12xf32, #tpu.memory_space<vmem>>, vector<8x1x12xf32>,
    return
  }
}

</mosaic_0001>

<llo_original>
// kernel: tpu_custom_call.1
$region0: #{tpu_custom_call.1}
  #allocation0 [shape = 'u32[]', space=smem, size = 0x4, offset = 0x4, fixed_abs, tag = 'smem constant byte address 0x4 - core index']
  #allocation1 [shape = 'u32[144,128]{1,0:T(1,128)}', space=vmem, size = 0x12000, scoped, tag = 'internal scratch']
  %s0 = inlined_call_operand.vmem [shape: s32[16,1], index: 0, kind: input, shape index: {}]
  %s1 = inlined_call_operand.hbm [shape: s32[2], index: 1, kind: input, shape index: {}]
  %s2 = inlined_call_operand.hbm [shape: f32[2,32], index: 2, kind: input, shape index: {}]
  %s3 = inlined_call_operand.vmem [shape: f32[2,32], index: 3, kind: input, shape index: {}]
  %s4 = inlined_call_operand.hbm [shape: f32[12,2,32], index: 4, kind: input, shape index: {}]
  %s5 = inlined_call_operand.vmem [shape: f32[50,16], index: 5, kind: input, shape index: {}]
  %s6 = inlined_call_operand.hbm [shape: f32[16,128], index: 6, kind: input, shape index: {}]
  %s7 = inlined_call_operand.vmem [shape: f32[32,128], index: 7, kind: input, shape index: {}]
  %s8 = inlined_call_operand.hbm [shape: f32[1,128], index: 8, kind: input, shape index: {}]
  %s9 = inlined_call_operand.vmem [shape: f32[32,32], index: 9, kind: input, shape index: {}]
  %s10 = inlined_call_operand.vmem [shape: f32[32,32], index: 10, kind: input, shape index: {}]
  %s11 = inlined_call_operand.vmem [shape: f32[32,32], index: 11, kind: input, shape index: {}]
  %s12 = inlined_call_operand.hbm [shape: f32[8,2,32], index: 12, kind: output, shape index: {0}]
  %s13 = inlined_call_operand.hbm [shape: f32[8,2,12], index: 13, kind: output, shape index: {1}]
  %s14 = inlined_call_operand.hbm [shape: f32[2,32], index: 14, kind: output, shape index: {2}]
  %s15 = inlined_call_operand.hbm [shape: f32[2,32], index: 15, kind: output, shape index: {3}]
  %16 = xla_tuple %s12, %s13, %s14, %s15
  %s17 = sld [smem:[#allocation0]]
  $region102: #{tpu_custom_call.1} parent=0
    _
  %s19 = ssub.s32 1, %s17
  %s20 = scalar_select 0, %s19, %s17
  $region1: #{tpu_custom_call.1} parent=0
    #allocation2 [shape = 'u8[512]{0}', space=smem, size = 0x200, scoped, tag = 'input window, operand 1, single buffered']
    #allocation3 [shape = 's32[1]{0}', space=sflag, size = 0x4, scoped, tag = 'scoped memory for tpu_custom_call.1']
    #allocation4 [shape = 's32[1]{0}', space=sflag, size = 0x4, scoped, tag = 'scoped memory for tpu_custom_call.1']
    #allocation5 [shape = 's32[1]{0}', space=sflag, size = 0x4, scoped, tag = 'scoped memory for tpu_custom_call.1']
    #allocation6 [shape = 'u8[1024]{0}', space=vmem, size = 0x400, scoped, tag = 'input window, operand 2, single buffered']
    #allocation7 [shape = 'u8[12288]{0}', space=vmem, size = 0x3000, scoped, tag = 'input window, operand 4, single buffered']
    #allocation8 [shape = 's32[1]{0}', space=sflag, size = 0x4, scoped, tag = 'scoped memory for tpu_custom_call.1']
    #allocation9 [shape = 'u8[8192]{0}', space=vmem, size = 0x2000, scoped, tag = 'input window, operand 6, single buffered']
    #allocation10 [shape = 'u8[512]{0}', space=vmem, size = 0x400, scoped, tag = 'input window, operand 8, single buffered']
    #allocation11 [shape = 's32[1]{0}', space=sflag, size = 0x4, scoped, tag = 'scoped memory for tpu_custom_call.1']
    #allocation12 [shape = 'u8[8192]{0}', space=vmem, size = 0x2000, scoped, tag = 'output window, operand 0, single buffered']
    #allocation13 [shape = 'u8[8192]{0}', space=vmem, size = 0x2000, scoped, tag = 'output window, operand 1, single buffered']
    #allocation14 [shape = 's32[1]{0}', space=sflag, size = 0x4, scoped, tag = 'scoped memory for tpu_custom_call.1']
    #allocation15 [shape = 'u8[1024]{0}', space=vmem, size = 0x400, scoped, tag = 'output window, operand 2, single buffered']
    #allocation16 [shape = 'u8[1024]{0}', space=vmem, size = 0x400, scoped, tag = 'output window, operand 3, single buffered']
    #allocation17 [shape = 's32[1]{0}', space=sflag, size = 0x4, scoped, tag = 'scoped memory for tpu_custom_call.1']
    %21 = vsyncpa [#allocation5], 0
    %22 = vsyncpa [#allocation3], 0
    %23 = vsyncpa [#allocation8], 0
    %24 = vsyncpa [#allocation11], 0
    %25 = vsyncpa [#allocation4], 0
    %26 = vsyncpa [#allocation14], 0
    %27 = vsyncpa [#allocation17], 0
    // Predicated region
    $region2: #{tpu_custom_call.1} parent=1 // pred_check
      _
    $region3: #{tpu_custom_call.1} parent=1 // pred_check_branch
      %29 = sbr.rel (0) target = $region5
    $region4: #{tpu_custom_call.1} parent=1 // pred_region
      _
    $region5: #{tpu_custom_call.1} parent=1 // pred_fallthru
      _
    // Predicated region
    $region6: #{tpu_custom_call.1} parent=1 // pred_check
      _
    $region7: #{tpu_custom_call.1} parent=1 // pred_check_branch
      %31 = sbr.rel (0) target = $region9
    $region8: #{tpu_custom_call.1} parent=1 // pred_region
      %s33 = ssub.s32 16, 16
      %34 = vsyncadd [#allocation5], %s33
      %37 = dma.hbm_to_smem %s1, 16, [#allocation2], [#allocation5]
    $region9: #{tpu_custom_call.1} parent=1 // pred_fallthru
      _
    // Predicated region
    $region10: #{tpu_custom_call.1} parent=1 // pred_check
      _
    $region11: #{tpu_custom_call.1} parent=1 // pred_check_branch
      %39 = sbr.rel (0) target = $region13
    $region12: #{tpu_custom_call.1} parent=1 // pred_region
      %s41 = ssub.s32 32, 32
      %42 = vsyncadd [#allocation3], %s41
      %s44 = sshll.u32 [#allocation6], 4
      %s45 = int_to_ptr.vmem [resolvable:$true] %s44
      %47 = dma.hbm_to_vmem [thread:$0]  %s2, 32, %s45, [#allocation3]
    $region13: #{tpu_custom_call.1} parent=1 // pred_fallthru
      _
    // Predicated region
    $region14: #{tpu_custom_call.1} parent=1 // pred_check
      _
    $region15: #{tpu_custom_call.1} parent=1 // pred_check_branch
      %49 = sbr.rel (0) target = $region17
    $region16: #{tpu_custom_call.1} parent=1 // pred_region
      _
    $region17: #{tpu_custom_call.1} parent=1 // pred_fallthru
      _
    // Predicated region
    $region18: #{tpu_custom_call.1} parent=1 // pred_check
      _
    $region19: #{tpu_custom_call.1} parent=1 // pred_check_branch
      %51 = sbr.rel (0) target = $region21
    $region20: #{tpu_custom_call.1} parent=1 // pred_region
      %s53 = ssub.s32 384, 384
      %54 = vsyncadd [#allocation8], %s53
      %s55 = sshll.u32 [#allocation7], 4
      %s56 = int_to_ptr.vmem [resolvable:$true] %s55
      %61 = dma.hbm_to_vmem [thread:$0]  %s4, 384, %s56, [#allocation8], 32, 32, 2
    $region21: #{tpu_custom_call.1} parent=1 // pred_fallthru
      _
    // Predicated region
    $region22: #{tpu_custom_call.1} parent=1 // pred_check
      _
    $region23: #{tpu_custom_call.1} parent=1 // pred_check_branch
      %63 = sbr.rel (0) target = $region25
    $region24: #{tpu_custom_call.1} parent=1 // pred_region
      _
    $region25: #{tpu_custom_call.1} parent=1 // pred_fallthru
      _
    // Predicated region
    $region26: #{tpu_custom_call.1} parent=1 // pred_check
      _
    $region27: #{tpu_custom_call.1} parent=1 // pred_check_branch
      %65 = sbr.rel (0) target = $region29
    $region28: #{tpu_custom_call.1} parent=1 // pred_region
      %s67 = ssub.s32 256, 256
      %68 = vsyncadd [#allocation8], %s67
      %s69 = sshll.u32 [#allocation9], 4
      %s70 = int_to_ptr.vmem [resolvable:$true] %s69
      %75 = dma.hbm_to_vmem [thread:$0]  %s6, 256, %s70, [#allocation8], 128, 128, 8
    $region29: #{tpu_custom_call.1} parent=1 // pred_fallthru
      _
    // Predicated region
    $region30: #{tpu_custom_call.1} parent=1 // pred_check
      _
    $region31: #{tpu_custom_call.1} parent=1 // pred_check_branch
      %77 = sbr.rel (0) target = $region33
    $region32: #{tpu_custom_call.1} parent=1 // pred_region
      _
    $region33: #{tpu_custom_call.1} parent=1 // pred_fallthru
      _
    // Predicated region
    $region34: #{tpu_custom_call.1} parent=1 // pred_check
      _
    $region35: #{tpu_custom_call.1} parent=1 // pred_check_branch
      %79 = sbr.rel (0) target = $region37
    $region36: #{tpu_custom_call.1} parent=1 // pred_region
      %s81 = ssub.s32 16, 16
      %82 = vsyncadd [#allocation11], %s81
      %s84 = sshll.u32 [#allocation10], 4
      %s85 = int_to_ptr.vmem [resolvable:$true] %s84
      %87 = dma.hbm_to_vmem [thread:$0]  %s8, 16, %s85, [#allocation11]
    $region37: #{tpu_custom_call.1} parent=1 // pred_fallthru
      _
    // Predicated region
    $region38: #{tpu_custom_call.1} parent=1 // pred_check
      _
    $region39: #{tpu_custom_call.1} parent=1 // pred_check_branch
      %89 = sbr.rel (0) target = $region41
    $region40: #{tpu_custom_call.1} parent=1 // pred_region
      _
    $region41: #{tpu_custom_call.1} parent=1 // pred_fallthru
      _
    // Predicated region
    $region42: #{tpu_custom_call.1} parent=1 // pred_check
      _
    $region43: #{tpu_custom_call.1} parent=1 // pred_check_branch
      %91 = sbr.rel (0) target = $region45
    $region44: #{tpu_custom_call.1} parent=1 // pred_region
      _
    $region45: #{tpu_custom_call.1} parent=1 // pred_fallthru
      _
    // Predicated region
    $region46: #{tpu_custom_call.1} parent=1 // pred_check
      _
    $region47: #{tpu_custom_call.1} parent=1 // pred_check_branch
      %93 = sbr.rel (0) target = $region49
    $region48: #{tpu_custom_call.1} parent=1 // pred_region
      _
    $region49: #{tpu_custom_call.1} parent=1 // pred_fallthru
      _
    // Predicated region
    $region50: #{tpu_custom_call.1} parent=1 // pred_check
      _
    $region51: #{tpu_custom_call.1} parent=1 // pred_check_branch
      %95 = sbr.rel (0) target = $region53
    $region52: #{tpu_custom_call.1} parent=1 // pred_region
      %96 = dma.done [#allocation5], 16
    $region53: #{tpu_custom_call.1} parent=1 // pred_fallthru
      _
    // Predicated region
    $region54: #{tpu_custom_call.1} parent=1 // pred_check
      _
    $region55: #{tpu_custom_call.1} parent=1 // pred_check_branch
      %98 = sbr.rel (0) target = $region57
    $region56: #{tpu_custom_call.1} parent=1 // pred_region
      %99 = dma.done [#allocation3], 32
    $region57: #{tpu_custom_call.1} parent=1 // pred_fallthru
      _
    // Predicated region
    $region58: #{tpu_custom_call.1} parent=1 // pred_check
      _
    $region59: #{tpu_custom_call.1} parent=1 // pred_check_branch
      %101 = sbr.rel (0) target = $region61
    $region60: #{tpu_custom_call.1} parent=1 // pred_region
      %102 = dma.done [#allocation8], 384
    $region61: #{tpu_custom_call.1} parent=1 // pred_fallthru
      _
    // Predicated region
    $region62: #{tpu_custom_call.1} parent=1 // pred_check
      _
    $region63: #{tpu_custom_call.1} parent=1 // pred_check_branch
      %104 = sbr.rel (0) target = $region65
    $region64: #{tpu_custom_call.1} parent=1 // pred_region
      %105 = dma.done [#allocation8], 256
    $region65: #{tpu_custom_call.1} parent=1 // pred_fallthru
      _
    // Predicated region
    $region66: #{tpu_custom_call.1} parent=1 // pred_check
      _
    $region67: #{tpu_custom_call.1} parent=1 // pred_check_branch
      %107 = sbr.rel (0) target = $region69
    $region68: #{tpu_custom_call.1} parent=1 // pred_region
      %108 = dma.done [#allocation11], 16
    $region69: #{tpu_custom_call.1} parent=1 // pred_fallthru
      _
    %109 = sfence
    %v110 = vld [vmem:[%s0] sm:$0xff]
    %v111 = vld [vmem:[%s0 + $0x8] sm:$0xff]
    %v112 = vlaneseq
    %v113 = vand.u32 %v112, 127
    %114 = vset.pattern.permute.xlu0 0
    %115 = vperm.xlu0 %114, %v110
    %v116 = vpop.permute.xlu0 %115
    %117 = vset.pattern.permute.xlu0 0
    %118 = vperm.xlu0 %117, %v111
    %v119 = vpop.permute.xlu0 %118
    %vm120 = vcmp.eq.s32.totalorder %v113, %v116
    %vm121 = vcmp.eq.s32.totalorder %v113, %v119
    %v122 = vsel %vm120, 1, 0
    %v123 = vsel %vm121, 1, 0
    %v124 = vcvt.s32.f32 %v122
    %v125 = vcvt.s32.f32 %v123
    %v126 = vld [vmem:[%s5] sm:$0xff]
    %v127 = vld [vmem:[%s5 + $0x8] sm:$0xff]
    %v128 = vld [vmem:[%s5 + $0x10] sm:$0xff]
    %v129 = vld [vmem:[%s5 + $0x18] sm:$0xff]
    %v130 = vld [vmem:[%s5 + $0x20] sm:$0xff]
    %v131 = vld [vmem:[%s5 + $0x28] sm:$0xff]
    %v132 = vld [vmem:[%s5 + $0x30] sm:$0x3]
    %vm133 = vcmask 408576
    %v135 = vsel %vm133, %v124, 0
    %v138 = vsel %vm133, %v125, 0
    %vm140 = vcmask 1041408
    %v142 = vsel %vm140, %v132, 0
    %144 = vmatprep.subr.mxu0 0.0
    %145 = vmatpush1.msra.mxu0 %v126
    %146 = vmatprep.subr.mxu0 0.0
    %147 = vmatpush1.msra.mxu0 %v127
    %148 = vmatprep.subr.mxu0 0.0
    %149 = vmatpush1.msra.mxu0 %v128
    %150 = vmatprep.subr.mxu0 0.0
    %151 = vmatpush1.msra.mxu0 %v129
    %152 = vmatprep.subr.mxu0 0.0
    %153 = vmatpush1.msra.mxu0 %v130
    %154 = vmatprep.subr.mxu0 0.0
    %155 = vmatpush1.msra.mxu0 %v131
    %156 = vmatprep.subr.mxu0 0.0
    %157 = vmatpush1.msra.mxu0 %v142
    %158 = vmatprep.subr.mxu0 0.0
    %159 = vmatpush1.msra.mxu0 0.0
    %160 = vmatprep.subr.mxu0 0.0
    %161 = vmatpush1.msra.mxu0 0.0
    %162 = vmatprep.subr.mxu0 0.0
    %163 = vmatpush1.msra.mxu0 0.0
    %164 = vmatprep.subr.mxu0 0.0
    %165 = vmatpush1.msra.mxu0 0.0
    %166 = vmatprep.subr.mxu0 0.0
    %167 = vmatpush1.msra.mxu0 0.0
    %168 = vmatprep.subr.mxu0 0.0
    %169 = vmatpush1.msra.mxu0 0.0
    %170 = vmatprep.subr.mxu0 0.0
    %171 = vmatpush1.msra.mxu0 0.0
    %172 = vmatprep.subr.mxu0 0.0
    %173 = vmatpush1.msra.mxu0 0.0
    %174 = vmatprep.subr.mxu0 0.0
    %175 = vmatpush1.msra.mxu0 0.0
    %176 = vmatprep.subr.mxu0 0.0
    %177 = vmatpush1.msra.mxu0 0.0
    %178 = vmatprep.subr.mxu0 0.0
    %179 = vmatpush1.msra.mxu0 0.0
    %180 = vmatprep.subr.mxu0 0.0
    %181 = vmatpush1.msra.mxu0 0.0
    %182 = vmatprep.subr.mxu0 0.0
    %183 = vmatpush1.msra.mxu0 0.0
    %184 = vmatprep.subr.mxu0 0.0
    %185 = vmatpush1.msra.mxu0 0.0
    %186 = vmatprep.subr.mxu0 0.0
    %187 = vmatpush1.msra.mxu0 0.0
    %188 = vmatprep.subr.mxu0 0.0
    %189 = vmatpush1.msra.mxu0 0.0
    %190 = vmatprep.subr.mxu0 0.0
    %191 = vmatpush1.msra.mxu0 0.0
    %192 = vmatprep.subr.mxu0 0.0
    %193 = vmatpush1.msra.mxu0 0.0
    %194 = vmatprep.subr.mxu0 0.0
    %195 = vmatpush1.msra.mxu0 0.0
    %196 = vmatprep.subr.mxu0 0.0
    %197 = vmatpush1.msra.mxu0 0.0
    %198 = vmatprep.subr.mxu0 0.0
    %199 = vmatpush1.msra.mxu0 0.0
    %200 = vmatprep.subr.mxu0 0.0
    %201 = vmatpush1.msra.mxu0 0.0
    %202 = vmatprep.subr.mxu0 0.0
    %203 = vmatpush1.msra.mxu0 0.0
    %204 = vmatprep.subr.mxu0 0.0
    %205 = vmatpush1.msra.mxu0 0.0
    %206 = vmatprep.subr.mxu0 0.0
    %207 = vmatpush1.msra.mxu0 0.0
    %208 = vmatprep.mubr.f32.mxu0 0.0
    %209 = vmatmul.mubr.f32.gmra.mrb[0].mxu0 %v135
    %v210 = vpop.f32.mrb[0].mxu0
    %v211 = vadd.f32 0.0, %v210
    %v212 = vpop.f32.mrb[0].mxu0
    %213 = vmatprep.mubr.f32.mxu0 0.0
    %214 = vmatmul.mubr.f32.gmra.mrb[0].mxu0 %v138
    %v215 = vpop.f32.mrb[0].mxu0
    %v216 = vadd.f32 0.0, %v215
    %v217 = vpop.f32.mrb[0].mxu0
    %218 = vdwg.mxu0
    %v219 = vld [vmem:[#allocation9] sm:$0xff]
    %v220 = vld [vmem:[#allocation9 + $0x8] sm:$0xff]
    %v221 = vld [vmem:[#allocation10] sm:$0x1]
    %v223 = vlaneseq
    %v224 = vshrl.u32 %v223, 7
    %v225 = vsub.s32 0, %v224
    %v226 = vrot.slane %v221, %v225
    %vm228 = vcmask 130048
    %v230 = vsel %vm228, %v211, 0
    %v233 = vsel %vm228, %v216, 0
    %235 = vmatprep.subr.mxu0 0.0
    %236 = vmatpush1.msra.mxu0 %v219
    %237 = vmatprep.subr.mxu0 0.0
    %238 = vmatpush1.msra.mxu0 %v220
    %239 = vmatprep.subr.mxu0 0.0
    %240 = vmatpush1.msra.mxu0 0.0
    %241 = vmatprep.subr.mxu0 0.0
    %242 = vmatpush1.msra.mxu0 0.0
    %243 = vmatprep.subr.mxu0 0.0
    %244 = vmatpush1.msra.mxu0 0.0
    %245 = vmatprep.subr.mxu0 0.0
    %246 = vmatpush1.msra.mxu0 0.0
    %247 = vmatprep.subr.mxu0 0.0
    %248 = vmatpush1.msra.mxu0 0.0
    %249 = vmatprep.subr.mxu0 0.0
    %250 = vmatpush1.msra.mxu0 0.0
    %251 = vmatprep.subr.mxu0 0.0
    %252 = vmatpush1.msra.mxu0 0.0
    %253 = vmatprep.subr.mxu0 0.0
    %254 = vmatpush1.msra.mxu0 0.0
    %255 = vmatprep.subr.mxu0 0.0
    %256 = vmatpush1.msra.mxu0 0.0
    %257 = vmatprep.subr.mxu0 0.0
    %258 = vmatpush1.msra.mxu0 0.0
    %259 = vmatprep.subr.mxu0 0.0
    %260 = vmatpush1.msra.mxu0 0.0
    %261 = vmatprep.subr.mxu0 0.0
    %262 = vmatpush1.msra.mxu0 0.0
    %263 = vmatprep.subr.mxu0 0.0
    %264 = vmatpush1.msra.mxu0 0.0
    %265 = vmatprep.subr.mxu0 0.0
    %266 = vmatpush1.msra.mxu0 0.0
    %267 = vmatprep.subr.mxu0 0.0
    %268 = vmatpush1.msra.mxu0 0.0
    %269 = vmatprep.subr.mxu0 0.0
    %270 = vmatpush1.msra.mxu0 0.0
    %271 = vmatprep.subr.mxu0 0.0
    %272 = vmatpush1.msra.mxu0 0.0
    %273 = vmatprep.subr.mxu0 0.0
    %274 = vmatpush1.msra.mxu0 0.0
    %275 = vmatprep.subr.mxu0 0.0
    %276 = vmatpush1.msra.mxu0 0.0
    %277 = vmatprep.subr.mxu0 0.0
    %278 = vmatpush1.msra.mxu0 0.0
    %279 = vmatprep.subr.mxu0 0.0
    %280 = vmatpush1.msra.mxu0 0.0
    %281 = vmatprep.subr.mxu0 0.0
    %282 = vmatpush1.msra.mxu0 0.0
    %283 = vmatprep.subr.mxu0 0.0
    %284 = vmatpush1.msra.mxu0 0.0
    %285 = vmatprep.subr.mxu0 0.0
    %286 = vmatpush1.msra.mxu0 0.0
    %287 = vmatprep.subr.mxu0 0.0
    %288 = vmatpush1.msra.mxu0 0.0
    %289 = vmatprep.subr.mxu0 0.0
    %290 = vmatpush1.msra.mxu0 0.0
    %291 = vmatprep.subr.mxu0 0.0
    %292 = vmatpush1.msra.mxu0 0.0
    %293 = vmatprep.subr.mxu0 0.0
    %294 = vmatpush1.msra.mxu0 0.0
    %295 = vmatprep.subr.mxu0 0.0
    %296 = vmatpush1.msra.mxu0 0.0
    %297 = vmatprep.subr.mxu0 0.0
    %298 = vmatpush1.msra.mxu0 0.0
    %299 = vmatprep.mubr.f32.mxu0 0.0
    %300 = vmatmul.mubr.f32.gmra.mrb[0].mxu0 %v230
    %v301 = vpop.f32.mrb[0].mxu0
    %v302 = vadd.f32 %v226, %v301
    %v303 = vpop.f32.mrb[0].mxu0
    %304 = vmatprep.mubr.f32.mxu0 0.0
    %305 = vmatmul.mubr.f32.gmra.mrb[0].mxu0 %v233
    %v306 = vpop.f32.mrb[0].mxu0
    %v307 = vadd.f32 %v226, %v306
    %v308 = vpop.f32.mrb[0].mxu0
    %309 = vdwg.mxu0
    %v312 = vcombine.high %v302, %v302
    %v314 = vunpack.c.l.s4 1983009808
    %v315 = vunpack.c.0.s8 %v314
    %v316 = vlaneseq
    %v317 = vshrl.u32 %v316, 7
    %v318 = vsub.s32 %v315, %v317
    %v319 = vrot.slane %v302, %v318
    %v321 = vunpack.c.l.s4 1983009808
    %v322 = vunpack.c.0.s8 %v321
    %v323 = vlaneseq
    %v324 = vshrl.u32 %v323, 7
    %v325 = vsub.s32 %v322, %v324
    %v326 = vrot.slane %v312, %v325
    %v327 = vcombine.high %v319, %v319
    %v328 = vcombine.high %v326, %v326
    %v329 = vcombine.high %v307, %v307
    %v331 = vunpack.c.l.s4 1983009808
    %v332 = vunpack.c.0.s8 %v331
    %v333 = vlaneseq
    %v334 = vshrl.u32 %v333, 7
    %v335 = vsub.s32 %v332, %v334
    %v336 = vrot.slane %v307, %v335
    %v338 = vunpack.c.l.s4 1983009808
    %v339 = vunpack.c.0.s8 %v338
    %v340 = vlaneseq
    %v341 = vshrl.u32 %v340, 7
    %v342 = vsub.s32 %v339, %v341
    %v343 = vrot.slane %v329, %v342
    %v344 = vcombine.high %v336, %v336
    %v345 = vcombine.high %v343, %v343
    %v354 = vld [vmem:[%s7] sm:$0xff]
    %v355 = vld [vmem:[%s7 + $0x8] sm:$0xff]
    %v356 = vld [vmem:[%s7 + $0x10] sm:$0xff]
    %v357 = vld [vmem:[%s7 + $0x18] sm:$0xff]
    %v358 = vld [vmem:[#allocation6] sm:$0x3]
    %v359 = vld [vmem:[%s3] sm:$0x3]
    %vm360 = vcmask 261120
    %v362 = vsel %vm360, %v358, 0
    %364 = vmatprep.subr.mxu0 0.0
    %365 = vmatpush1.msra.mxu0 %v354
    %366 = vmatprep.subr.mxu0 0.0
    %367 = vmatpush1.msra.mxu0 %v355
    %368 = vmatprep.subr.mxu0 0.0
    %369 = vmatpush1.msra.mxu0 %v356
    %370 = vmatprep.subr.mxu0 0.0
    %371 = vmatpush1.msra.mxu0 %v357
    %372 = vmatprep.subr.mxu0 0.0
    %373 = vmatpush1.msra.mxu0 0.0
    %374 = vmatprep.subr.mxu0 0.0
    %375 = vmatpush1.msra.mxu0 0.0
    %376 = vmatprep.subr.mxu0 0.0
    %377 = vmatpush1.msra.mxu0 0.0
    %378 = vmatprep.subr.mxu0 0.0
    %379 = vmatpush1.msra.mxu0 0.0
    %380 = vmatprep.subr.mxu0 0.0
    %381 = vmatpush1.msra.mxu0 0.0
    %382 = vmatprep.subr.mxu0 0.0
    %383 = vmatpush1.msra.mxu0 0.0
    %384 = vmatprep.subr.mxu0 0.0
    %385 = vmatpush1.msra.mxu0 0.0
    %386 = vmatprep.subr.mxu0 0.0
    %387 = vmatpush1.msra.mxu0 0.0
    %388 = vmatprep.subr.mxu0 0.0
    %389 = vmatpush1.msra.mxu0 0.0
    %390 = vmatprep.subr.mxu0 0.0
    %391 = vmatpush1.msra.mxu0 0.0
    %392 = vmatprep.subr.mxu0 0.0
    %393 = vmatpush1.msra.mxu0 0.0
    %394 = vmatprep.subr.mxu0 0.0
    %395 = vmatpush1.msra.mxu0 0.0
    %396 = vmatprep.subr.mxu0 0.0
    %397 = vmatpush1.msra.mxu0 0.0
    %398 = vmatprep.subr.mxu0 0.0
    %399 = vmatpush1.msra.mxu0 0.0
    %400 = vmatprep.subr.mxu0 0.0
    %401 = vmatpush1.msra.mxu0 0.0
    %402 = vmatprep.subr.mxu0 0.0
    %403 = vmatpush1.msra.mxu0 0.0
    %404 = vmatprep.subr.mxu0 0.0
    %405 = vmatpush1.msra.mxu0 0.0
    %406 = vmatprep.subr.mxu0 0.0
    %407 = vmatpush1.msra.mxu0 0.0
    %408 = vmatprep.subr.mxu0 0.0
    %409 = vmatpush1.msra.mxu0 0.0
    %410 = vmatprep.subr.mxu0 0.0
    %411 = vmatpush1.msra.mxu0 0.0
    %412 = vmatprep.subr.mxu0 0.0
    %413 = vmatpush1.msra.mxu0 0.0
    %414 = vmatprep.subr.mxu0 0.0
    %415 = vmatpush1.msra.mxu0 0.0
    %416 = vmatprep.subr.mxu0 0.0
    %417 = vmatpush1.msra.mxu0 0.0
    %418 = vmatprep.subr.mxu0 0.0
    %419 = vmatpush1.msra.mxu0 0.0
    %420 = vmatprep.subr.mxu0 0.0
    %421 = vmatpush1.msra.mxu0 0.0
    %422 = vmatprep.subr.mxu0 0.0
    %423 = vmatpush1.msra.mxu0 0.0
    %424 = vmatprep.subr.mxu0 0.0
    %425 = vmatpush1.msra.mxu0 0.0
    %426 = vmatprep.subr.mxu0 0.0
    %427 = vmatpush1.msra.mxu0 0.0
    %428 = vmatprep.mubr.f32.mxu0 0.0
    %429 = vmatmul.mubr.f32.gmra.mrb[0].mxu0 %v362
    %v430 = vpop.f32.mrb[0].mxu0
    %v431 = vadd.f32 0.0, %v430
    %v432 = vpop.f32.mrb[0].mxu0
    %433 = vdwg.mxu0
    %v434 = vadd.f32 %v319, %v431
    %v435 = vxor.u32 %v434, 2147483648
    %v436 = vmul.f32 %v435, 1.442695
    %v437 = vpow.pop %v436
    %v438 = vadd.f32 %v437, 1.0
    %v439 = vrcp.pop %v438
    %v440 = vmul.f32 1.0, %v439
    %v441 = vtanh.pop %v434
    %v444 = vunpack.c.l.s4 1983009808
    %v445 = vunpack.c.0.s8 %v444
    %v446 = vlaneseq
    %v447 = vshrl.u32 %v446, 7
    %v448 = vsub.s32 %v445, %v447
    %v449 = vrot.slane %v359, %v448
    %450 = vrot.lane.b32.xlu0 %v449, 32
    %v451 = vpop.permute.xlu0 %450
    %v453 = vmul.f32 %v440, %v451
    %455 = vrot.lane.b32.xlu0 %v441, 32
    %v456 = vpop.permute.xlu0 %455
    %v458 = vmul.f32 %v440, %v456
    %460 = vrot.lane.b32.xlu0 %v458, 32
    %v461 = vpop.permute.xlu0 %460
    %v463 = vadd.f32 %v453, %v461
    %v464 = vtanh.pop %v463
    %466 = vrot.lane.b32.xlu0 %v464, 32
    %v467 = vpop.permute.xlu0 %466
    %v469 = vmul.f32 %v440, %v467
    %v472 = vunpack.c.l.s4 1983009808
    %v473 = vunpack.c.0.s8 %v472
    %v474 = vlaneseq
    %v475 = vshrl.u32 %v474, 7
    %v476 = vsub.s32 %v473, %v475
    %v477 = vrot.slane %v469, %v476
    %478 = vrot.lane.b32.xlu0 %v477, 64
    %v479 = vpop.permute.xlu0 %478
    %v480 = vsel %vm360, %v479, 0
    %482 = vmatprep.subr.mxu0 0.0
    %483 = vmatpush1.msra.mxu0 %v354
    %484 = vmatprep.subr.mxu0 0.0
    %485 = vmatpush1.msra.mxu0 %v355
    %486 = vmatprep.subr.mxu0 0.0
    %487 = vmatpush1.msra.mxu0 %v356
    %488 = vmatprep.subr.mxu0 0.0
    %489 = vmatpush1.msra.mxu0 %v357
    %490 = vmatprep.subr.mxu0 0.0
    %491 = vmatpush1.msra.mxu0 0.0
    %492 = vmatprep.subr.mxu0 0.0
    %493 = vmatpush1.msra.mxu0 0.0
    %494 = vmatprep.subr.mxu0 0.0
    %495 = vmatpush1.msra.mxu0 0.0
    %496 = vmatprep.subr.mxu0 0.0
    %497 = vmatpush1.msra.mxu0 0.0
    %498 = vmatprep.subr.mxu0 0.0
    %499 = vmatpush1.msra.mxu0 0.0
    %500 = vmatprep.subr.mxu0 0.0
    %501 = vmatpush1.msra.mxu0 0.0
    %502 = vmatprep.subr.mxu0 0.0
    %503 = vmatpush1.msra.mxu0 0.0
    %504 = vmatprep.subr.mxu0 0.0
    %505 = vmatpush1.msra.mxu0 0.0
    %506 = vmatprep.subr.mxu0 0.0
    %507 = vmatpush1.msra.mxu0 0.0
    %508 = vmatprep.subr.mxu0 0.0
    %509 = vmatpush1.msra.mxu0 0.0
    %510 = vmatprep.subr.mxu0 0.0
    %511 = vmatpush1.msra.mxu0 0.0
    %512 = vmatprep.subr.mxu0 0.0
    %513 = vmatpush1.msra.mxu0 0.0
    %514 = vmatprep.subr.mxu0 0.0
    %515 = vmatpush1.msra.mxu0 0.0
    %516 = vmatprep.subr.mxu0 0.0
    %517 = vmatpush1.msra.mxu0 0.0
    %518 = vmatprep.subr.mxu0 0.0
    %519 = vmatpush1.msra.mxu0 0.0
    %520 = vmatprep.subr.mxu0 0.0
    %521 = vmatpush1.msra.mxu0 0.0
    %522 = vmatprep.subr.mxu0 0.0
    %523 = vmatpush1.msra.mxu0 0.0
    %524 = vmatprep.subr.mxu0 0.0
    %525 = vmatpush1.msra.mxu0 0.0
    %526 = vmatprep.subr.mxu0 0.0
    %527 = vmatpush1.msra.mxu0 0.0
    %528 = vmatprep.subr.mxu0 0.0
    %529 = vmatpush1.msra.mxu0 0.0
    %530 = vmatprep.subr.mxu0 0.0
    %531 = vmatpush1.msra.mxu0 0.0
    %532 = vmatprep.subr.mxu0 0.0
    %533 = vmatpush1.msra.mxu0 0.0
    %534 = vmatprep.subr.mxu0 0.0
    %535 = vmatpush1.msra.mxu0 0.0
    %536 = vmatprep.subr.mxu0 0.0
    %537 = vmatpush1.msra.mxu0 0.0
    %538 = vmatprep.subr.mxu0 0.0
    %539 = vmatpush1.msra.mxu0 0.0
    %540 = vmatprep.subr.mxu0 0.0
    %541 = vmatpush1.msra.mxu0 0.0
    %542 = vmatprep.subr.mxu0 0.0
    %543 = vmatpush1.msra.mxu0 0.0
    %544 = vmatprep.subr.mxu0 0.0
    %545 = vmatpush1.msra.mxu0 0.0
    %546 = vmatprep.mubr.f32.mxu0 0.0
    %547 = vmatmul.mubr.f32.gmra.mrb[0].mxu0 %v480
    %v548 = vpop.f32.mrb[0].mxu0
    %v549 = vadd.f32 0.0, %v548
    %v550 = vpop.f32.mrb[0].mxu0
    %551 = vdwg.mxu0
    %v552 = vadd.f32 %v327, %v549
    %v553 = vxor.u32 %v552, 2147483648
    %v554 = vmul.f32 %v553, 1.442695
    %v555 = vpow.pop %v554
    %v556 = vadd.f32 %v555, 1.0
    %v557 = vrcp.pop %v556
    %v558 = vmul.f32 1.0, %v557
    %v559 = vtanh.pop %v552
    %v560 = vmul.f32 %v558, %v463
    %562 = vrot.lane.b32.xlu0 %v559, 32
    %v563 = vpop.permute.xlu0 %562
    %v565 = vmul.f32 %v558, %v563
    %567 = vrot.lane.b32.xlu0 %v565, 32
    %v568 = vpop.permute.xlu0 %567
    %v570 = vadd.f32 %v560, %v568
    %v571 = vtanh.pop %v570
    %573 = vrot.lane.b32.xlu0 %v571, 32
    %v574 = vpop.permute.xlu0 %573
    %v576 = vmul.f32 %v558, %v574
    %v579 = vunpack.c.l.s4 1983009808
    %v580 = vunpack.c.0.s8 %v579
    %v581 = vlaneseq
    %v582 = vshrl.u32 %v581, 7
    %v583 = vsub.s32 %v580, %v582
    %v584 = vrot.slane %v576, %v583
    %585 = vrot.lane.b32.xlu0 %v584, 64
    %v586 = vpop.permute.xlu0 %585
    %v587 = vsel %vm360, %v586, 0
    %589 = vmatprep.subr.mxu0 0.0
    %590 = vmatpush1.msra.mxu0 %v354
    %591 = vmatprep.subr.mxu0 0.0
    %592 = vmatpush1.msra.mxu0 %v355
    %593 = vmatprep.subr.mxu0 0.0
    %594 = vmatpush1.msra.mxu0 %v356
    %595 = vmatprep.subr.mxu0 0.0
    %596 = vmatpush1.msra.mxu0 %v357
    %597 = vmatprep.subr.mxu0 0.0
    %598 = vmatpush1.msra.mxu0 0.0
    %599 = vmatprep.subr.mxu0 0.0
    %600 = vmatpush1.msra.mxu0 0.0
    %601 = vmatprep.subr.mxu0 0.0
    %602 = vmatpush1.msra.mxu0 0.0
    %603 = vmatprep.subr.mxu0 0.0
    %604 = vmatpush1.msra.mxu0 0.0
    %605 = vmatprep.subr.mxu0 0.0
    %606 = vmatpush1.msra.mxu0 0.0
    %607 = vmatprep.subr.mxu0 0.0
    %608 = vmatpush1.msra.mxu0 0.0
    %609 = vmatprep.subr.mxu0 0.0
    %610 = vmatpush1.msra.mxu0 0.0
    %611 = vmatprep.subr.mxu0 0.0
    %612 = vmatpush1.msra.mxu0 0.0
    %613 = vmatprep.subr.mxu0 0.0
    %614 = vmatpush1.msra.mxu0 0.0
    %615 = vmatprep.subr.mxu0 0.0
    %616 = vmatpush1.msra.mxu0 0.0
    %617 = vmatprep.subr.mxu0 0.0
    %618 = vmatpush1.msra.mxu0 0.0
    %619 = vmatprep.subr.mxu0 0.0
    %620 = vmatpush1.msra.mxu0 0.0
    %621 = vmatprep.subr.mxu0 0.0
    %622 = vmatpush1.msra.mxu0 0.0
    %623 = vmatprep.subr.mxu0 0.0
    %624 = vmatpush1.msra.mxu0 0.0
    %625 = vmatprep.subr.mxu0 0.0
    %626 = vmatpush1.msra.mxu0 0.0
    %627 = vmatprep.subr.mxu0 0.0
    %628 = vmatpush1.msra.mxu0 0.0
    %629 = vmatprep.subr.mxu0 0.0
    %630 = vmatpush1.msra.mxu0 0.0
    %631 = vmatprep.subr.mxu0 0.0
    %632 = vmatpush1.msra.mxu0 0.0
    %633 = vmatprep.subr.mxu0 0.0
    %634 = vmatpush1.msra.mxu0 0.0
    %635 = vmatprep.subr.mxu0 0.0
    %636 = vmatpush1.msra.mxu0 0.0
    %637 = vmatprep.subr.mxu0 0.0
    %638 = vmatpush1.msra.mxu0 0.0
    %639 = vmatprep.subr.mxu0 0.0
    %640 = vmatpush1.msra.mxu0 0.0
    %641 = vmatprep.subr.mxu0 0.0
    %642 = vmatpush1.msra.mxu0 0.0
    %643 = vmatprep.subr.mxu0 0.0
    %644 = vmatpush1.msra.mxu0 0.0
    %645 = vmatprep.subr.mxu0 0.0
    %646 = vmatpush1.msra.mxu0 0.0
    %647 = vmatprep.subr.mxu0 0.0
    %648 = vmatpush1.msra.mxu0 0.0
    %649 = vmatprep.subr.mxu0 0.0
    %650 = vmatpush1.msra.mxu0 0.0
    %651 = vmatprep.subr.mxu0 0.0
    %652 = vmatpush1.msra.mxu0 0.0
    %653 = vmatprep.mubr.f32.mxu0 0.0
    %654 = vmatmul.mubr.f32.gmra.mrb[0].mxu0 %v587
    %v655 = vpop.f32.mrb[0].mxu0
    %v656 = vadd.f32 0.0, %v655
    %v657 = vpop.f32.mrb[0].mxu0
    %658 = vdwg.mxu0
    %v659 = vadd.f32 %v326, %v656
    %v660 = vxor.u32 %v659, 2147483648
    %v661 = vmul.f32 %v660, 1.442695
    %v662 = vpow.pop %v661
    %v663 = vadd.f32 %v662, 1.0
    %v664 = vrcp.pop %v663
    %v665 = vmul.f32 1.0, %v664
    %v666 = vtanh.pop %v659
    %v667 = vmul.f32 %v665, %v570
    %669 = vrot.lane.b32.xlu0 %v666, 32
    %v670 = vpop.permute.xlu0 %669
    %v672 = vmul.f32 %v665, %v670
    %674 = vrot.lane.b32.xlu0 %v672, 32
    %v675 = vpop.permute.xlu0 %674
    %v677 = vadd.f32 %v667, %v675
    %v678 = vtanh.pop %v677
    %680 = vrot.lane.b32.xlu0 %v678, 32
    %v681 = vpop.permute.xlu0 %680
    %v683 = vmul.f32 %v665, %v681
    %v686 = vunpack.c.l.s4 1983009808
    %v687 = vunpack.c.0.s8 %v686
    %v688 = vlaneseq
    %v689 = vshrl.u32 %v688, 7
    %v690 = vsub.s32 %v687, %v689
    %v691 = vrot.slane %v683, %v690
    %692 = vrot.lane.b32.xlu0 %v691, 64
    %v693 = vpop.permute.xlu0 %692
    %v694 = vsel %vm360, %v693, 0
    %696 = vmatprep.subr.mxu0 0.0
    %697 = vmatpush1.msra.mxu0 %v354
    %698 = vmatprep.subr.mxu0 0.0
    %699 = vmatpush1.msra.mxu0 %v355
    %700 = vmatprep.subr.mxu0 0.0
    %701 = vmatpush1.msra.mxu0 %v356
    %702 = vmatprep.subr.mxu0 0.0
    %703 = vmatpush1.msra.mxu0 %v357
    %704 = vmatprep.subr.mxu0 0.0
    %705 = vmatpush1.msra.mxu0 0.0
    %706 = vmatprep.subr.mxu0 0.0
    %707 = vmatpush1.msra.mxu0 0.0
    %708 = vmatprep.subr.mxu0 0.0
    %709 = vmatpush1.msra.mxu0 0.0
    %710 = vmatprep.subr.mxu0 0.0
    %711 = vmatpush1.msra.mxu0 0.0
    %712 = vmatprep.subr.mxu0 0.0
    %713 = vmatpush1.msra.mxu0 0.0
    %714 = vmatprep.subr.mxu0 0.0
    %715 = vmatpush1.msra.mxu0 0.0
    %716 = vmatprep.subr.mxu0 0.0
    %717 = vmatpush1.msra.mxu0 0.0
    %718 = vmatprep.subr.mxu0 0.0
    %719 = vmatpush1.msra.mxu0 0.0
    %720 = vmatprep.subr.mxu0 0.0
    %721 = vmatpush1.msra.mxu0 0.0
    %722 = vmatprep.subr.mxu0 0.0
    %723 = vmatpush1.msra.mxu0 0.0
    %724 = vmatprep.subr.mxu0 0.0
    %725 = vmatpush1.msra.mxu0 0.0
    %726 = vmatprep.subr.mxu0 0.0
    %727 = vmatpush1.msra.mxu0 0.0
    %728 = vmatprep.subr.mxu0 0.0
    %729 = vmatpush1.msra.mxu0 0.0
    %730 = vmatprep.subr.mxu0 0.0
    %731 = vmatpush1.msra.mxu0 0.0
    %732 = vmatprep.subr.mxu0 0.0
    %733 = vmatpush1.msra.mxu0 0.0
    %734 = vmatprep.subr.mxu0 0.0
    %735 = vmatpush1.msra.mxu0 0.0
    %736 = vmatprep.subr.mxu0 0.0
    %737 = vmatpush1.msra.mxu0 0.0
    %738 = vmatprep.subr.mxu0 0.0
    %739 = vmatpush1.msra.mxu0 0.0
    %740 = vmatprep.subr.mxu0 0.0
    %741 = vmatpush1.msra.mxu0 0.0
    %742 = vmatprep.subr.mxu0 0.0
    %743 = vmatpush1.msra.mxu0 0.0
    %744 = vmatprep.subr.mxu0 0.0
    %745 = vmatpush1.msra.mxu0 0.0
    %746 = vmatprep.subr.mxu0 0.0
    %747 = vmatpush1.msra.mxu0 0.0
    %748 = vmatprep.subr.mxu0 0.0
    %749 = vmatpush1.msra.mxu0 0.0
    %750 = vmatprep.subr.mxu0 0.0
    %751 = vmatpush1.msra.mxu0 0.0
    %752 = vmatprep.subr.mxu0 0.0
    %753 = vmatpush1.msra.mxu0 0.0
    %754 = vmatprep.subr.mxu0 0.0
    %755 = vmatpush1.msra.mxu0 0.0
    %756 = vmatprep.subr.mxu0 0.0
    %757 = vmatpush1.msra.mxu0 0.0
    %758 = vmatprep.subr.mxu0 0.0
    %759 = vmatpush1.msra.mxu0 0.0
    %760 = vmatprep.mubr.f32.mxu0 0.0
    %761 = vmatmul.mubr.f32.gmra.mrb[0].mxu0 %v694
    %v762 = vpop.f32.mrb[0].mxu0
    %v763 = vadd.f32 0.0, %v762
    %v764 = vpop.f32.mrb[0].mxu0
    %765 = vdwg.mxu0
    %v766 = vadd.f32 %v328, %v763
    %v767 = vxor.u32 %v766, 2147483648
    %v768 = vmul.f32 %v767, 1.442695
    %v769 = vpow.pop %v768
    %v770 = vadd.f32 %v769, 1.0
    %v771 = vrcp.pop %v770
    %v772 = vmul.f32 1.0, %v771
    %v773 = vtanh.pop %v766
    %v774 = vmul.f32 %v772, %v677
    %776 = vrot.lane.b32.xlu0 %v773, 32
    %v777 = vpop.permute.xlu0 %776
    %v779 = vmul.f32 %v772, %v777
    %781 = vrot.lane.b32.xlu0 %v779, 32
    %v782 = vpop.permute.xlu0 %781
    %v784 = vadd.f32 %v774, %v782
    %v785 = vtanh.pop %v784
    %787 = vrot.lane.b32.xlu0 %v785, 32
    %v788 = vpop.permute.xlu0 %787
    %v790 = vmul.f32 %v772, %v788
    %v793 = vunpack.c.l.s4 1983009808
    %v794 = vunpack.c.0.s8 %v793
    %v795 = vlaneseq
    %v796 = vshrl.u32 %v795, 7
    %v797 = vsub.s32 %v794, %v796
    %v798 = vrot.slane %v790, %v797
    %799 = vrot.lane.b32.xlu0 %v798, 64
    %v800 = vpop.permute.xlu0 %799
    %v801 = vsel %vm360, %v800, 0
    %803 = vmatprep.subr.mxu0 0.0
    %804 = vmatpush1.msra.mxu0 %v354
    %805 = vmatprep.subr.mxu0 0.0
    %806 = vmatpush1.msra.mxu0 %v355
    %807 = vmatprep.subr.mxu0 0.0
    %808 = vmatpush1.msra.mxu0 %v356
    %809 = vmatprep.subr.mxu0 0.0
    %810 = vmatpush1.msra.mxu0 %v357
    %811 = vmatprep.subr.mxu0 0.0
    %812 = vmatpush1.msra.mxu0 0.0
    %813 = vmatprep.subr.mxu0 0.0
    %814 = vmatpush1.msra.mxu0 0.0
    %815 = vmatprep.subr.mxu0 0.0
    %816 = vmatpush1.msra.mxu0 0.0
    %817 = vmatprep.subr.mxu0 0.0
    %818 = vmatpush1.msra.mxu0 0.0
    %819 = vmatprep.subr.mxu0 0.0
    %820 = vmatpush1.msra.mxu0 0.0
    %821 = vmatprep.subr.mxu0 0.0
    %822 = vmatpush1.msra.mxu0 0.0
    %823 = vmatprep.subr.mxu0 0.0
    %824 = vmatpush1.msra.mxu0 0.0
    %825 = vmatprep.subr.mxu0 0.0
    %826 = vmatpush1.msra.mxu0 0.0
    %827 = vmatprep.subr.mxu0 0.0
    %828 = vmatpush1.msra.mxu0 0.0
    %829 = vmatprep.subr.mxu0 0.0
    %830 = vmatpush1.msra.mxu0 0.0
    %831 = vmatprep.subr.mxu0 0.0
    %832 = vmatpush1.msra.mxu0 0.0
    %833 = vmatprep.subr.mxu0 0.0
    %834 = vmatpush1.msra.mxu0 0.0
    %835 = vmatprep.subr.mxu0 0.0
    %836 = vmatpush1.msra.mxu0 0.0
    %837 = vmatprep.subr.mxu0 0.0
    %838 = vmatpush1.msra.mxu0 0.0
    %839 = vmatprep.subr.mxu0 0.0
    %840 = vmatpush1.msra.mxu0 0.0
    %841 = vmatprep.subr.mxu0 0.0
    %842 = vmatpush1.msra.mxu0 0.0
    %843 = vmatprep.subr.mxu0 0.0
    %844 = vmatpush1.msra.mxu0 0.0
    %845 = vmatprep.subr.mxu0 0.0
    %846 = vmatpush1.msra.mxu0 0.0
    %847 = vmatprep.subr.mxu0 0.0
    %848 = vmatpush1.msra.mxu0 0.0
    %849 = vmatprep.subr.mxu0 0.0
    %850 = vmatpush1.msra.mxu0 0.0
    %851 = vmatprep.subr.mxu0 0.0
    %852 = vmatpush1.msra.mxu0 0.0
    %853 = vmatprep.subr.mxu0 0.0
    %854 = vmatpush1.msra.mxu0 0.0
    %855 = vmatprep.subr.mxu0 0.0
    %856 = vmatpush1.msra.mxu0 0.0
    %857 = vmatprep.subr.mxu0 0.0
    %858 = vmatpush1.msra.mxu0 0.0
    %859 = vmatprep.subr.mxu0 0.0
    %860 = vmatpush1.msra.mxu0 0.0
    %861 = vmatprep.subr.mxu0 0.0
    %862 = vmatpush1.msra.mxu0 0.0
    %863 = vmatprep.subr.mxu0 0.0
    %864 = vmatpush1.msra.mxu0 0.0
    %865 = vmatprep.subr.mxu0 0.0
    %866 = vmatpush1.msra.mxu0 0.0
    %867 = vmatprep.mubr.f32.mxu0 0.0
    %868 = vmatmul.mubr.f32.gmra.mrb[0].mxu0 %v801
    %v869 = vpop.f32.mrb[0].mxu0
    %v870 = vadd.f32 0.0, %v869
    %v871 = vpop.f32.mrb[0].mxu0
    %872 = vdwg.mxu0
    %v873 = vadd.f32 %v336, %v870
    %v874 = vxor.u32 %v873, 2147483648
    %v875 = vmul.f32 %v874, 1.442695
    %v876 = vpow.pop %v875
    %v877 = vadd.f32 %v876, 1.0
    %v878 = vrcp.pop %v877
    %v879 = vmul.f32 1.0, %v878
    %v880 = vtanh.pop %v873
    %v881 = vmul.f32 %v879, %v784
    %883 = vrot.lane.b32.xlu0 %v880, 32
    %v884 = vpop.permute.xlu0 %883
    %v886 = vmul.f32 %v879, %v884
    %888 = vrot.lane.b32.xlu0 %v886, 32
    %v889 = vpop.permute.xlu0 %888
    %v891 = vadd.f32 %v881, %v889
    %v892 = vtanh.pop %v891
    %894 = vrot.lane.b32.xlu0 %v892, 32
    %v895 = vpop.permute.xlu0 %894
    %v897 = vmul.f32 %v879, %v895
    %v900 = vunpack.c.l.s4 1983009808
    %v901 = vunpack.c.0.s8 %v900
    %v902 = vlaneseq
    %v903 = vshrl.u32 %v902, 7
    %v904 = vsub.s32 %v901, %v903
    %v905 = vrot.slane %v897, %v904
    %906 = vrot.lane.b32.xlu0 %v905, 64
    %v907 = vpop.permute.xlu0 %906
    %v908 = vsel %vm360, %v907, 0
    %910 = vmatprep.subr.mxu0 0.0
    %911 = vmatpush1.msra.mxu0 %v354
    %912 = vmatprep.subr.mxu0 0.0
    %913 = vmatpush1.msra.mxu0 %v355
    %914 = vmatprep.subr.mxu0 0.0
    %915 = vmatpush1.msra.mxu0 %v356
    %916 = vmatprep.subr.mxu0 0.0
    %917 = vmatpush1.msra.mxu0 %v357
    %918 = vmatprep.subr.mxu0 0.0
    %919 = vmatpush1.msra.mxu0 0.0
    %920 = vmatprep.subr.mxu0 0.0
    %921 = vmatpush1.msra.mxu0 0.0
    %922 = vmatprep.subr.mxu0 0.0
    %923 = vmatpush1.msra.mxu0 0.0
    %924 = vmatprep.subr.mxu0 0.0
    %925 = vmatpush1.msra.mxu0 0.0
    %926 = vmatprep.subr.mxu0 0.0
    %927 = vmatpush1.msra.mxu0 0.0
    %928 = vmatprep.subr.mxu0 0.0
    %929 = vmatpush1.msra.mxu0 0.0
    %930 = vmatprep.subr.mxu0 0.0
    %931 = vmatpush1.msra.mxu0 0.0
    %932 = vmatprep.subr.mxu0 0.0
    %933 = vmatpush1.msra.mxu0 0.0
    %934 = vmatprep.subr.mxu0 0.0
    %935 = vmatpush1.msra.mxu0 0.0
    %936 = vmatprep.subr.mxu0 0.0
    %937 = vmatpush1.msra.mxu0 0.0
    %938 = vmatprep.subr.mxu0 0.0
    %939 = vmatpush1.msra.mxu0 0.0
    %940 = vmatprep.subr.mxu0 0.0
    %941 = vmatpush1.msra.mxu0 0.0
    %942 = vmatprep.subr.mxu0 0.0
    %943 = vmatpush1.msra.mxu0 0.0
    %944 = vmatprep.subr.mxu0 0.0
    %945 = vmatpush1.msra.mxu0 0.0
    %946 = vmatprep.subr.mxu0 0.0
    %947 = vmatpush1.msra.mxu0 0.0
    %948 = vmatprep.subr.mxu0 0.0
    %949 = vmatpush1.msra.mxu0 0.0
    %950 = vmatprep.subr.mxu0 0.0
    %951 = vmatpush1.msra.mxu0 0.0
    %952 = vmatprep.subr.mxu0 0.0
    %953 = vmatpush1.msra.mxu0 0.0
    %954 = vmatprep.subr.mxu0 0.0
    %955 = vmatpush1.msra.mxu0 0.0
    %956 = vmatprep.subr.mxu0 0.0
    %957 = vmatpush1.msra.mxu0 0.0
    %958 = vmatprep.subr.mxu0 0.0
    %959 = vmatpush1.msra.mxu0 0.0
    %960 = vmatprep.subr.mxu0 0.0
    %961 = vmatpush1.msra.mxu0 0.0
    %962 = vmatprep.subr.mxu0 0.0
    %963 = vmatpush1.msra.mxu0 0.0
    %964 = vmatprep.subr.mxu0 0.0
    %965 = vmatpush1.msra.mxu0 0.0
    %966 = vmatprep.subr.mxu0 0.0
    %967 = vmatpush1.msra.mxu0 0.0
    %968 = vmatprep.subr.mxu0 0.0
    %969 = vmatpush1.msra.mxu0 0.0
    %970 = vmatprep.subr.mxu0 0.0
    %971 = vmatpush1.msra.mxu0 0.0
    %972 = vmatprep.subr.mxu0 0.0
    %973 = vmatpush1.msra.mxu0 0.0
    %974 = vmatprep.mubr.f32.mxu0 0.0
    %975 = vmatmul.mubr.f32.gmra.mrb[0].mxu0 %v908
    %v976 = vpop.f32.mrb[0].mxu0
    %v977 = vadd.f32 0.0, %v976
    %v978 = vpop.f32.mrb[0].mxu0
    %979 = vdwg.mxu0
    %v980 = vadd.f32 %v344, %v977
    %v981 = vxor.u32 %v980, 2147483648
    %v982 = vmul.f32 %v981, 1.442695
    %v983 = vpow.pop %v982
    %v984 = vadd.f32 %v983, 1.0
    %v985 = vrcp.pop %v984
    %v986 = vmul.f32 1.0, %v985
    %v987 = vtanh.pop %v980
    %v988 = vmul.f32 %v986, %v891
    %990 = vrot.lane.b32.xlu0 %v987, 32
    %v991 = vpop.permute.xlu0 %990
    %v993 = vmul.f32 %v986, %v991
    %995 = vrot.lane.b32.xlu0 %v993, 32
    %v996 = vpop.permute.xlu0 %995
    %v998 = vadd.f32 %v988, %v996
    %v999 = vtanh.pop %v998
    %1001 = vrot.lane.b32.xlu0 %v999, 32
    %v1002 = vpop.permute.xlu0 %1001
    %v1004 = vmul.f32 %v986, %v1002
    %v1007 = vunpack.c.l.s4 1983009808
    %v1008 = vunpack.c.0.s8 %v1007
    %v1009 = vlaneseq
    %v1010 = vshrl.u32 %v1009, 7
    %v1011 = vsub.s32 %v1008, %v1010
    %v1012 = vrot.slane %v1004, %v1011
    %1013 = vrot.lane.b32.xlu0 %v1012, 64
    %v1014 = vpop.permute.xlu0 %1013
    %v1015 = vsel %vm360, %v1014, 0
    %1017 = vmatprep.subr.mxu0 0.0
    %1018 = vmatpush1.msra.mxu0 %v354
    %1019 = vmatprep.subr.mxu0 0.0
    %1020 = vmatpush1.msra.mxu0 %v355
    %1021 = vmatprep.subr.mxu0 0.0
    %1022 = vmatpush1.msra.mxu0 %v356
    %1023 = vmatprep.subr.mxu0 0.0
    %1024 = vmatpush1.msra.mxu0 %v357
    %1025 = vmatprep.subr.mxu0 0.0
    %1026 = vmatpush1.msra.mxu0 0.0
    %1027 = vmatprep.subr.mxu0 0.0
    %1028 = vmatpush1.msra.mxu0 0.0
    %1029 = vmatprep.subr.mxu0 0.0
    %1030 = vmatpush1.msra.mxu0 0.0
    %1031 = vmatprep.subr.mxu0 0.0
    %1032 = vmatpush1.msra.mxu0 0.0
    %1033 = vmatprep.subr.mxu0 0.0
    %1034 = vmatpush1.msra.mxu0 0.0
    %1035 = vmatprep.subr.mxu0 0.0
    %1036 = vmatpush1.msra.mxu0 0.0
    %1037 = vmatprep.subr.mxu0 0.0
    %1038 = vmatpush1.msra.mxu0 0.0
    %1039 = vmatprep.subr.mxu0 0.0
    %1040 = vmatpush1.msra.mxu0 0.0
    %1041 = vmatprep.subr.mxu0 0.0
    %1042 = vmatpush1.msra.mxu0 0.0
    %1043 = vmatprep.subr.mxu0 0.0
    %1044 = vmatpush1.msra.mxu0 0.0
    %1045 = vmatprep.subr.mxu0 0.0
    %1046 = vmatpush1.msra.mxu0 0.0
    %1047 = vmatprep.subr.mxu0 0.0
    %1048 = vmatpush1.msra.mxu0 0.0
    %1049 = vmatprep.subr.mxu0 0.0
    %1050 = vmatpush1.msra.mxu0 0.0
    %1051 = vmatprep.subr.mxu0 0.0
    %1052 = vmatpush1.msra.mxu0 0.0
    %1053 = vmatprep.subr.mxu0 0.0
    %1054 = vmatpush1.msra.mxu0 0.0
    %1055 = vmatprep.subr.mxu0 0.0
    %1056 = vmatpush1.msra.mxu0 0.0
    %1057 = vmatprep.subr.mxu0 0.0
    %1058 = vmatpush1.msra.mxu0 0.0
    %1059 = vmatprep.subr.mxu0 0.0
    %1060 = vmatpush1.msra.mxu0 0.0
    %1061 = vmatprep.subr.mxu0 0.0
    %1062 = vmatpush1.msra.mxu0 0.0
    %1063 = vmatprep.subr.mxu0 0.0
    %1064 = vmatpush1.msra.mxu0 0.0
    %1065 = vmatprep.subr.mxu0 0.0
    %1066 = vmatpush1.msra.mxu0 0.0
    %1067 = vmatprep.subr.mxu0 0.0
    %1068 = vmatpush1.msra.mxu0 0.0
    %1069 = vmatprep.subr.mxu0 0.0
    %1070 = vmatpush1.msra.mxu0 0.0
    %1071 = vmatprep.subr.mxu0 0.0
    %1072 = vmatpush1.msra.mxu0 0.0
    %1073 = vmatprep.subr.mxu0 0.0
    %1074 = vmatpush1.msra.mxu0 0.0
    %1075 = vmatprep.subr.mxu0 0.0
    %1076 = vmatpush1.msra.mxu0 0.0
    %1077 = vmatprep.subr.mxu0 0.0
    %1078 = vmatpush1.msra.mxu0 0.0
    %1079 = vmatprep.subr.mxu0 0.0
    %1080 = vmatpush1.msra.mxu0 0.0
    %1081 = vmatprep.mubr.f32.mxu0 0.0
    %1082 = vmatmul.mubr.f32.gmra.mrb[0].mxu0 %v1015
    %v1083 = vpop.f32.mrb[0].mxu0
    %v1084 = vadd.f32 0.0, %v1083
    %v1085 = vpop.f32.mrb[0].mxu0
    %1086 = vdwg.mxu0
    %v1087 = vadd.f32 %v343, %v1084
    %v1088 = vxor.u32 %v1087, 2147483648
    %v1089 = vmul.f32 %v1088, 1.442695
    %v1090 = vpow.pop %v1089
    %v1091 = vadd.f32 %v1090, 1.0
    %v1092 = vrcp.pop %v1091
    %v1093 = vmul.f32 1.0, %v1092
    %v1094 = vtanh.pop %v1087
    %v1095 = vmul.f32 %v1093, %v998
    %1097 = vrot.lane.b32.xlu0 %v1094, 32
    %v1098 = vpop.permute.xlu0 %1097
    %v1100 = vmul.f32 %v1093, %v1098
    %1102 = vrot.lane.b32.xlu0 %v1100, 32
    %v1103 = vpop.permute.xlu0 %1102
    %v1105 = vadd.f32 %v1095, %v1103
    %v1106 = vtanh.pop %v1105
    %1108 = vrot.lane.b32.xlu0 %v1106, 32
    %v1109 = vpop.permute.xlu0 %1108
    %v1111 = vmul.f32 %v1093, %v1109
    %v1114 = vunpack.c.l.s4 1983009808
    %v1115 = vunpack.c.0.s8 %v1114
    %v1116 = vlaneseq
    %v1117 = vshrl.u32 %v1116, 7
    %v1118 = vsub.s32 %v1115, %v1117
    %v1119 = vrot.slane %v1111, %v1118
    %1120 = vrot.lane.b32.xlu0 %v1119, 64
    %v1121 = vpop.permute.xlu0 %1120
    %v1122 = vsel %vm360, %v1121, 0
    %1124 = vmatprep.subr.mxu0 0.0
    %1125 = vmatpush1.msra.mxu0 %v354
    %1126 = vmatprep.subr.mxu0 0.0
    %1127 = vmatpush1.msra.mxu0 %v355
    %1128 = vmatprep.subr.mxu0 0.0
    %1129 = vmatpush1.msra.mxu0 %v356
    %1130 = vmatprep.subr.mxu0 0.0
    %1131 = vmatpush1.msra.mxu0 %v357
    %1132 = vmatprep.subr.mxu0 0.0
    %1133 = vmatpush1.msra.mxu0 0.0
    %1134 = vmatprep.subr.mxu0 0.0
    %1135 = vmatpush1.msra.mxu0 0.0
    %1136 = vmatprep.subr.mxu0 0.0
    %1137 = vmatpush1.msra.mxu0 0.0
    %1138 = vmatprep.subr.mxu0 0.0
    %1139 = vmatpush1.msra.mxu0 0.0
    %1140 = vmatprep.subr.mxu0 0.0
    %1141 = vmatpush1.msra.mxu0 0.0
    %1142 = vmatprep.subr.mxu0 0.0
    %1143 = vmatpush1.msra.mxu0 0.0
    %1144 = vmatprep.subr.mxu0 0.0
    %1145 = vmatpush1.msra.mxu0 0.0
    %1146 = vmatprep.subr.mxu0 0.0
    %1147 = vmatpush1.msra.mxu0 0.0
    %1148 = vmatprep.subr.mxu0 0.0
    %1149 = vmatpush1.msra.mxu0 0.0
    %1150 = vmatprep.subr.mxu0 0.0
    %1151 = vmatpush1.msra.mxu0 0.0
    %1152 = vmatprep.subr.mxu0 0.0
    %1153 = vmatpush1.msra.mxu0 0.0
    %1154 = vmatprep.subr.mxu0 0.0
    %1155 = vmatpush1.msra.mxu0 0.0
    %1156 = vmatprep.subr.mxu0 0.0
    %1157 = vmatpush1.msra.mxu0 0.0
    %1158 = vmatprep.subr.mxu0 0.0
    %1159 = vmatpush1.msra.mxu0 0.0
    %1160 = vmatprep.subr.mxu0 0.0
    %1161 = vmatpush1.msra.mxu0 0.0
    %1162 = vmatprep.subr.mxu0 0.0
    %1163 = vmatpush1.msra.mxu0 0.0
    %1164 = vmatprep.subr.mxu0 0.0
    %1165 = vmatpush1.msra.mxu0 0.0
    %1166 = vmatprep.subr.mxu0 0.0
    %1167 = vmatpush1.msra.mxu0 0.0
    %1168 = vmatprep.subr.mxu0 0.0
    %1169 = vmatpush1.msra.mxu0 0.0
    %1170 = vmatprep.subr.mxu0 0.0
    %1171 = vmatpush1.msra.mxu0 0.0
    %1172 = vmatprep.subr.mxu0 0.0
    %1173 = vmatpush1.msra.mxu0 0.0
    %1174 = vmatprep.subr.mxu0 0.0
    %1175 = vmatpush1.msra.mxu0 0.0
    %1176 = vmatprep.subr.mxu0 0.0
    %1177 = vmatpush1.msra.mxu0 0.0
    %1178 = vmatprep.subr.mxu0 0.0
    %1179 = vmatpush1.msra.mxu0 0.0
    %1180 = vmatprep.subr.mxu0 0.0
    %1181 = vmatpush1.msra.mxu0 0.0
    %1182 = vmatprep.subr.mxu0 0.0
    %1183 = vmatpush1.msra.mxu0 0.0
    %1184 = vmatprep.subr.mxu0 0.0
    %1185 = vmatpush1.msra.mxu0 0.0
    %1186 = vmatprep.subr.mxu0 0.0
    %1187 = vmatpush1.msra.mxu0 0.0
    %1188 = vmatprep.mubr.f32.mxu0 0.0
    %1189 = vmatmul.mubr.f32.gmra.mrb[0].mxu0 %v1122
    %v1190 = vpop.f32.mrb[0].mxu0
    %v1191 = vadd.f32 0.0, %v1190
    %v1192 = vpop.f32.mrb[0].mxu0
    %1193 = vdwg.mxu0
    %v1194 = vadd.f32 %v345, %v1191
    %v1195 = vxor.u32 %v1194, 2147483648
    %v1196 = vmul.f32 %v1195, 1.442695
    %v1197 = vpow.pop %v1196
    %v1198 = vadd.f32 %v1197, 1.0
    %v1199 = vrcp.pop %v1198
    %v1200 = vmul.f32 1.0, %v1199
    %v1201 = vtanh.pop %v1194
    %v1202 = vmul.f32 %v1200, %v1105
    %1204 = vrot.lane.b32.xlu0 %v1201, 32
    %v1205 = vpop.permute.xlu0 %1204
    %v1207 = vmul.f32 %v1200, %v1205
    %1209 = vrot.lane.b32.xlu0 %v1207, 32
    %v1210 = vpop.permute.xlu0 %1209
    %v1212 = vadd.f32 %v1202, %v1210
    %v1213 = vtanh.pop %v1212
    %1215 = vrot.lane.b32.xlu0 %v1213, 32
    %v1216 = vpop.permute.xlu0 %1215
    %v1218 = vmul.f32 %v1200, %v1216
    %v1221 = vunpack.c.l.s4 1983009808
    %v1222 = vunpack.c.0.s8 %v1221
    %v1223 = vlaneseq
    %v1224 = vshrl.u32 %v1223, 7
    %v1225 = vsub.s32 %v1222, %v1224
    %v1226 = vrot.slane %v1218, %v1225
    %1227 = vrot.lane.b32.xlu0 %v1226, 64
    %v1228 = vpop.permute.xlu0 %1227
    %vm1230 = vcmask 254976
    %1231 = vst.msk [vmem:[#allocation15] sm:$0x3] %vm1230, %v1228
    %v1234 = vunpack.c.l.s4 1983009808
    %v1235 = vunpack.c.0.s8 %v1234
    %v1236 = vlaneseq
    %v1237 = vshrl.u32 %v1236, 7
    %v1238 = vsub.s32 %v1235, %v1237
    %v1239 = vrot.slane %v1212, %v1238
    %1240 = vrot.lane.b32.xlu0 %v1239, 96
    %v1241 = vpop.permute.xlu0 %1240
    %1243 = vst.msk [vmem:[#allocation16] sm:$0x3] %vm1230, %v1241
    %v1244 = vld [vmem:[%s9] sm:$0xff]
    %v1245 = vld [vmem:[%s9 + $0x8] sm:$0xff]
    %v1246 = vld [vmem:[%s9 + $0x10] sm:$0xff]
    %v1247 = vld [vmem:[%s9 + $0x18] sm:$0xff]
    %v1248 = vcombine.low %v469, %v576
    %v1249 = vcombine.low %v683, %v790
    %v1251 = vunpack.c.l.s4 1983009808
    %v1252 = vunpack.c.0.s8 %v1251
    %v1253 = vlaneseq
    %v1254 = vshrl.u32 %v1253, 7
    %v1255 = vsub.s32 %v1252, %v1254
    %v1256 = vrot.slane %v1248, %v1255
    %v1258 = vunpack.c.l.s4 1983009808
    %v1259 = vunpack.c.0.s8 %v1258
    %v1260 = vlaneseq
    %v1261 = vshrl.u32 %v1260, 7
    %v1262 = vsub.s32 %v1259, %v1261
    %v1263 = vrot.slane %v1249, %v1262
    %v1264 = vcombine.low %v1256, %v1263
    %v1265 = vcombine.low %v897, %v1004
    %v1266 = vcombine.low %v1111, %v1218
    %v1268 = vunpack.c.l.s4 1983009808
    %v1269 = vunpack.c.0.s8 %v1268
    %v1270 = vlaneseq
    %v1271 = vshrl.u32 %v1270, 7
    %v1272 = vsub.s32 %v1269, %v1271
    %v1273 = vrot.slane %v1265, %v1272
    %v1275 = vunpack.c.l.s4 1983009808
    %v1276 = vunpack.c.0.s8 %v1275
    %v1277 = vlaneseq
    %v1278 = vshrl.u32 %v1277, 7
    %v1279 = vsub.s32 %v1276, %v1278
    %v1280 = vrot.slane %v1266, %v1279
    %v1281 = vcombine.low %v1273, %v1280
    %1282 = vrot.lane.b32.xlu0 %v1264, 64
    %v1283 = vpop.permute.xlu0 %1282
    %1284 = vrot.lane.b32.xlu0 %v1281, 64
    %v1285 = vpop.permute.xlu0 %1284
    %v1286 = vsel %vm360, %v1283, 0
    %v1288 = vsel %vm360, %v1285, 0
    %1290 = vmatprep.subr.mxu0 0.0
    %1291 = vmatpush1.msra.mxu0 %v1244
    %1292 = vmatprep.subr.mxu0 0.0
    %1293 = vmatpush1.msra.mxu0 %v1245
    %1294 = vmatprep.subr.mxu0 0.0
    %1295 = vmatpush1.msra.mxu0 %v1246
    %1296 = vmatprep.subr.mxu0 0.0
    %1297 = vmatpush1.msra.mxu0 %v1247
    %1298 = vmatprep.subr.mxu0 0.0
    %1299 = vmatpush1.msra.mxu0 0.0
    %1300 = vmatprep.subr.mxu0 0.0
    %1301 = vmatpush1.msra.mxu0 0.0
    %1302 = vmatprep.subr.mxu0 0.0
    %1303 = vmatpush1.msra.mxu0 0.0
    %1304 = vmatprep.subr.mxu0 0.0
    %1305 = vmatpush1.msra.mxu0 0.0
    %1306 = vmatprep.subr.mxu0 0.0
    %1307 = vmatpush1.msra.mxu0 0.0
    %1308 = vmatprep.subr.mxu0 0.0
    %1309 = vmatpush1.msra.mxu0 0.0
    %1310 = vmatprep.subr.mxu0 0.0
    %1311 = vmatpush1.msra.mxu0 0.0
    %1312 = vmatprep.subr.mxu0 0.0
    %1313 = vmatpush1.msra.mxu0 0.0
    %1314 = vmatprep.subr.mxu0 0.0
    %1315 = vmatpush1.msra.mxu0 0.0
    %1316 = vmatprep.subr.mxu0 0.0
    %1317 = vmatpush1.msra.mxu0 0.0
    %1318 = vmatprep.subr.mxu0 0.0
    %1319 = vmatpush1.msra.mxu0 0.0
    %1320 = vmatprep.subr.mxu0 0.0
    %1321 = vmatpush1.msra.mxu0 0.0
    %1322 = vmatprep.subr.mxu0 0.0
    %1323 = vmatpush1.msra.mxu0 0.0
    %1324 = vmatprep.subr.mxu0 0.0
    %1325 = vmatpush1.msra.mxu0 0.0
    %1326 = vmatprep.subr.mxu0 0.0
    %1327 = vmatpush1.msra.mxu0 0.0
    %1328 = vmatprep.subr.mxu0 0.0
    %1329 = vmatpush1.msra.mxu0 0.0
    %1330 = vmatprep.subr.mxu0 0.0
    %1331 = vmatpush1.msra.mxu0 0.0
    %1332 = vmatprep.subr.mxu0 0.0
    %1333 = vmatpush1.msra.mxu0 0.0
    %1334 = vmatprep.subr.mxu0 0.0
    %1335 = vmatpush1.msra.mxu0 0.0
    %1336 = vmatprep.subr.mxu0 0.0
    %1337 = vmatpush1.msra.mxu0 0.0
    %1338 = vmatprep.subr.mxu0 0.0
    %1339 = vmatpush1.msra.mxu0 0.0
    %1340 = vmatprep.subr.mxu0 0.0
    %1341 = vmatpush1.msra.mxu0 0.0
    %1342 = vmatprep.subr.mxu0 0.0
    %1343 = vmatpush1.msra.mxu0 0.0
    %1344 = vmatprep.subr.mxu0 0.0
    %1345 = vmatpush1.msra.mxu0 0.0
    %1346 = vmatprep.subr.mxu0 0.0
    %1347 = vmatpush1.msra.mxu0 0.0
    %1348 = vmatprep.subr.mxu0 0.0
    %1349 = vmatpush1.msra.mxu0 0.0
    %1350 = vmatprep.subr.mxu0 0.0
    %1351 = vmatpush1.msra.mxu0 0.0
    %1352 = vmatprep.subr.mxu0 0.0
    %1353 = vmatpush1.msra.mxu0 0.0
    %1354 = vmatprep.mubr.f32.mxu0 0.0
    %1355 = vmatmul.mubr.f32.gmra.mrb[0].mxu0 %v1286
    %v1356 = vpop.f32.mrb[0].mxu0
    %v1357 = vadd.f32 0.0, %v1356
    %v1358 = vpop.f32.mrb[0].mxu0
    %1359 = vmatprep.mubr.f32.mxu0 0.0
    %1360 = vmatmul.mubr.f32.gmra.mrb[0].mxu0 %v1288
    %v1361 = vpop.f32.mrb[0].mxu0
    %v1362 = vadd.f32 0.0, %v1361
    %v1363 = vpop.f32.mrb[0].mxu0
    %1364 = vdwg.mxu0
    %v1367 = vcombine.high %v1357, %v1357
    %v1369 = vunpack.c.l.s4 1983009808
    %v1370 = vunpack.c.0.s8 %v1369
    %v1371 = vlaneseq
    %v1372 = vshrl.u32 %v1371, 7
    %v1373 = vsub.s32 %v1370, %v1372
    %v1374 = vrot.slane %v1357, %v1373
    %v1376 = vunpack.c.l.s4 1983009808
    %v1377 = vunpack.c.0.s8 %v1376
    %v1378 = vlaneseq
    %v1379 = vshrl.u32 %v1378, 7
    %v1380 = vsub.s32 %v1377, %v1379
    %v1381 = vrot.slane %v1367, %v1380
    %v1382 = vcombine.high %v1374, %v1374
    %v1383 = vcombine.high %v1381, %v1381
    %v1384 = vcombine.high %v1362, %v1362
    %v1386 = vunpack.c.l.s4 1983009808
    %v1387 = vunpack.c.0.s8 %v1386
    %v1388 = vlaneseq
    %v1389 = vshrl.u32 %v1388, 7
    %v1390 = vsub.s32 %v1387, %v1389
    %v1391 = vrot.slane %v1362, %v1390
    %v1393 = vunpack.c.l.s4 1983009808
    %v1394 = vunpack.c.0.s8 %v1393
    %v1395 = vlaneseq
    %v1396 = vshrl.u32 %v1395, 7
    %v1397 = vsub.s32 %v1394, %v1396
    %v1398 = vrot.slane %v1384, %v1397
    %v1399 = vcombine.high %v1391, %v1391
    %v1400 = vcombine.high %v1398, %v1398
    %v1401 = vld [vmem:[#allocation7] sm:$0x3]
    %v1402 = vld [vmem:[#allocation7 + $0x2] sm:$0x3]
    %v1403 = vld [vmem:[#allocation7 + $0x4] sm:$0x3]
    %v1404 = vld [vmem:[#allocation7 + $0x6] sm:$0x3]
    %v1405 = vld [vmem:[#allocation7 + $0x8] sm:$0x3]
    %v1406 = vld [vmem:[#allocation7 + $0xa] sm:$0x3]
    %v1407 = vld [vmem:[#allocation7 + $0xc] sm:$0x3]
    %v1408 = vld [vmem:[#allocation7 + $0xe] sm:$0x3]
    %v1409 = vld [vmem:[#allocation7 + $0x10] sm:$0x3]
    %v1410 = vld [vmem:[#allocation7 + $0x12] sm:$0x3]
    %v1411 = vld [vmem:[#allocation7 + $0x14] sm:$0x3]
    %v1412 = vld [vmem:[#allocation7 + $0x16] sm:$0x3]
    %v1413 = vld [vmem:[%s10] sm:$0xff]
    %v1414 = vld [vmem:[%s10 + $0x8] sm:$0xff]
    %v1415 = vld [vmem:[%s10 + $0x10] sm:$0xff]
    %v1416 = vld [vmem:[%s10 + $0x18] sm:$0xff]
    %v1417 = vld [vmem:[%s11] sm:$0xff]
    %v1418 = vld [vmem:[%s11 + $0x8] sm:$0xff]
    %v1419 = vld [vmem:[%s11 + $0x10] sm:$0xff]
    %v1420 = vld [vmem:[%s11 + $0x18] sm:$0xff]
    %s1421 = sld [smem:[#allocation2]]
    %v1422 = vstv %s1421
    %vm1423 = vcmp.ge.s32.totalorder %v113, %v1422
    %v1424 = vsel %vm1423, 1, 0
    %v1425 = vcvt.s32.f32 %v1424
    %v1426 = vmul.f32 %v1425, -1e+30
    %v1427 = vlaneseq
    %v1428 = vshrl.u32 %v1427, 7
    %v1429 = vsub.s32 0, %v1428
    %v1430 = vrot.slane %v1374, %v1429
    %v1431 = vlaneseq
    %v1432 = vshrl.u32 %v1431, 7
    %v1433 = vsub.s32 0, %v1432
    %v1434 = vrot.slane %v1382, %v1433
    %v1435 = vlaneseq
    %v1436 = vshrl.u32 %v1435, 7
    %v1437 = vsub.s32 0, %v1436
    %v1438 = vrot.slane %v1381, %v1437
    %v1439 = vlaneseq
    %v1440 = vshrl.u32 %v1439, 7
    %v1441 = vsub.s32 0, %v1440
    %v1442 = vrot.slane %v1383, %v1441
    %v1443 = vlaneseq
    %v1444 = vshrl.u32 %v1443, 7
    %v1445 = vsub.s32 0, %v1444
    %v1446 = vrot.slane %v1391, %v1445
    %v1447 = vlaneseq
    %v1448 = vshrl.u32 %v1447, 7
    %v1449 = vsub.s32 0, %v1448
    %v1450 = vrot.slane %v1399, %v1449
    %v1451 = vlaneseq
    %v1452 = vshrl.u32 %v1451, 7
    %v1453 = vsub.s32 0, %v1452
    %v1454 = vrot.slane %v1398, %v1453
    %v1455 = vlaneseq
    %v1456 = vshrl.u32 %v1455, 7
    %v1457 = vsub.s32 0, %v1456
    %v1458 = vrot.slane %v1400, %v1457
    %vm1459 = vcmask 1041409
    %v1460 = vsel %vm1459, %v1434, %v1430
    %vm1461 = vcmask 1042434
    %v1462 = vsel %vm1461, %v1438, %v1460
    %vm1463 = vcmask 1043459
    %v1464 = vsel %vm1463, %v1442, %v1462
    %vm1465 = vcmask 1044484
    %v1466 = vsel %vm1465, %v1446, %v1464
    %vm1467 = vcmask 1045509
    %v1468 = vsel %vm1467, %v1450, %v1466
    %vm1469 = vcmask 1046534
    %v1470 = vsel %vm1469, %v1454, %v1468
    %vm1471 = vcmask 1047559
    %v1472 = vsel %vm1471, %v1458, %v1470
    %v1485 = vrot.slane %v1402, 7
    %v1486 = vsel %vm1459, %v1485, %v1401
    %v1487 = vrot.slane %v1403, 6
    %v1488 = vsel %vm1461, %v1487, %v1486
    %v1489 = vrot.slane %v1404, 5
    %v1490 = vsel %vm1463, %v1489, %v1488
    %v1491 = vrot.slane %v1405, 4
    %v1492 = vsel %vm1465, %v1491, %v1490
    %v1493 = vrot.slane %v1406, 3
    %v1494 = vsel %vm1467, %v1493, %v1492
    %v1495 = vrot.slane %v1407, 2
    %v1496 = vsel %vm1469, %v1495, %v1494
    %v1497 = vrot.slane %v1408, 1
    %v1498 = vsel %vm1471, %v1497, %v1496
    %v1499 = vrot.slane %v1410, 7
    %v1500 = vsel %vm1459, %v1499, %v1409
    %v1501 = vrot.slane %v1411, 6
    %v1502 = vsel %vm1461, %v1501, %v1500
    %v1503 = vrot.slane %v1412, 5
    %v1504 = vsel %vm1463, %v1503, %v1502
    %v1505 = vsel %vm360, %v1472, 0
    %v1507 = vsel %vm360, %v1498, 0
    %v1509 = vsel %vm360, %v1504, 0
    %1511 = vmatprep.subr.mxu0 0.0
    %1512 = vmatpush1.xpose.msra.mxu0 %v1507
    %1513 = vmatprep.subr.mxu0 0.0
    %1514 = vmatpush1.xpose.msra.mxu0 %v1509
    %1515 = vmatprep.subr.mxu0 0.0
    %1516 = vmatpush1.xpose.msra.mxu0 0.0
    %1517 = vmatprep.subr.mxu0 0.0
    %1518 = vmatpush1.xpose.msra.mxu0 0.0
    %1519 = vmatprep.subr.mxu0 0.0
    %1520 = vmatpush1.xpose.msra.mxu0 0.0
    %1521 = vmatprep.subr.mxu0 0.0
    %1522 = vmatpush1.xpose.msra.mxu0 0.0
    %1523 = vmatprep.subr.mxu0 0.0
    %1524 = vmatpush1.xpose.msra.mxu0 0.0
    %1525 = vmatprep.subr.mxu0 0.0
    %1526 = vmatpush1.xpose.msra.mxu0 0.0
    %1527 = vmatprep.subr.mxu0 0.0
    %1528 = vmatpush1.xpose.msra.mxu0 0.0
    %1529 = vmatprep.subr.mxu0 0.0
    %1530 = vmatpush1.xpose.msra.mxu0 0.0
    %1531 = vmatprep.subr.mxu0 0.0
    %1532 = vmatpush1.xpose.msra.mxu0 0.0
    %1533 = vmatprep.subr.mxu0 0.0
    %1534 = vmatpush1.xpose.msra.mxu0 0.0
    %1535 = vmatprep.subr.mxu0 0.0
    %1536 = vmatpush1.xpose.msra.mxu0 0.0
    %1537 = vmatprep.subr.mxu0 0.0
    %1538 = vmatpush1.xpose.msra.mxu0 0.0
    %1539 = vmatprep.subr.mxu0 0.0
    %1540 = vmatpush1.xpose.msra.mxu0 0.0
    %1541 = vmatprep.subr.mxu0 0.0
    %1542 = vmatpush1.xpose.msra.mxu0 0.0
    %1543 = vmatprep.subr.mxu0 0.0
    %1544 = vmatpush1.xpose.msra.mxu0 0.0
    %1545 = vmatprep.subr.mxu0 0.0
    %1546 = vmatpush1.xpose.msra.mxu0 0.0
    %1547 = vmatprep.subr.mxu0 0.0
    %1548 = vmatpush1.xpose.msra.mxu0 0.0
    %1549 = vmatprep.subr.mxu0 0.0
    %1550 = vmatpush1.xpose.msra.mxu0 0.0
    %1551 = vmatprep.subr.mxu0 0.0
    %1552 = vmatpush1.xpose.msra.mxu0 0.0
    %1553 = vmatprep.subr.mxu0 0.0
    %1554 = vmatpush1.xpose.msra.mxu0 0.0
    %1555 = vmatprep.subr.mxu0 0.0
    %1556 = vmatpush1.xpose.msra.mxu0 0.0
    %1557 = vmatprep.subr.mxu0 0.0
    %1558 = vmatpush1.xpose.msra.mxu0 0.0
    %1559 = vmatprep.subr.mxu0 0.0
    %1560 = vmatpush1.xpose.msra.mxu0 0.0
    %1561 = vmatprep.subr.mxu0 0.0
    %1562 = vmatpush1.xpose.msra.mxu0 0.0
    %1563 = vmatprep.subr.mxu0 0.0
    %1564 = vmatpush1.xpose.msra.mxu0 0.0
    %1565 = vmatprep.subr.mxu0 0.0
    %1566 = vmatpush1.xpose.msra.mxu0 0.0
    %1567 = vmatprep.subr.mxu0 0.0
    %1568 = vmatpush1.xpose.msra.mxu0 0.0
    %1569 = vmatprep.subr.mxu0 0.0
    %1570 = vmatpush1.xpose.msra.mxu0 0.0
    %1571 = vmatprep.subr.mxu0 0.0
    %1572 = vmatpush1.xpose.msra.mxu0 0.0
    %1573 = vmatprep.subr.mxu0 0.0
    %1574 = vmatpush1.xpose.msra.mxu0 0.0
    %1575 = vmatprep.mubr.f32.mxu0 0.0
    %1576 = vmatmul.mubr.f32.gmra.mrb[0].mxu0 %v1505
    %v1577 = vpop.f32.mrb[0].mxu0
    %v1578 = vadd.f32 %v1426, %v1577
    %v1579 = vpop.f32.mrb[0].mxu0
    %1580 = vdwg.mxu0
    %vm1581 = vcmask 97280
    %v1582 = vsel %vm1581, %v1578, -inf
    %1583 = vmax.xlane.f32.xlu0 %v1582
    %v1584 = vpop.xlane.xlu0 %1583
    %v1585 = vsub.f32 %v1578, %v1584
    %v1586 = vmul.f32 %v1585, 1.442695
    %v1587 = vpow.pop %v1586
    %v1588 = vsel %vm1581, %v1587, 0.0
    %1589 = vadd.xlane.f32.xlu0 %v1588
    %v1590 = vpop.xlane.xlu0 %1589
    %v1591 = vrcp.pop %v1590
    %v1592 = vmul.f32 %v1587, %v1591
    %v1595 = vsel %vm1581, %v1592, 0
    %vm1597 = vcmask 1043456
    %v1598 = vsel %vm1597, %v1504, 0
    %1600 = vmatprep.subr.mxu0 0.0
    %1601 = vmatpush1.msra.mxu0 %v1498
    %1602 = vmatprep.subr.mxu0 0.0
    %1603 = vmatpush1.msra.mxu0 %v1598
    %1604 = vmatprep.subr.mxu0 0.0
    %1605 = vmatpush1.msra.mxu0 0.0
    %1606 = vmatprep.subr.mxu0 0.0
    %1607 = vmatpush1.msra.mxu0 0.0
    %1608 = vmatprep.subr.mxu0 0.0
    %1609 = vmatpush1.msra.mxu0 0.0
    %1610 = vmatprep.subr.mxu0 0.0
    %1611 = vmatpush1.msra.mxu0 0.0
    %1612 = vmatprep.subr.mxu0 0.0
    %1613 = vmatpush1.msra.mxu0 0.0
    %1614 = vmatprep.subr.mxu0 0.0
    %1615 = vmatpush1.msra.mxu0 0.0
    %1616 = vmatprep.subr.mxu0 0.0
    %1617 = vmatpush1.msra.mxu0 0.0
    %1618 = vmatprep.subr.mxu0 0.0
    %1619 = vmatpush1.msra.mxu0 0.0
    %1620 = vmatprep.subr.mxu0 0.0
    %1621 = vmatpush1.msra.mxu0 0.0
    %1622 = vmatprep.subr.mxu0 0.0
    %1623 = vmatpush1.msra.mxu0 0.0
    %1624 = vmatprep.subr.mxu0 0.0
    %1625 = vmatpush1.msra.mxu0 0.0
    %1626 = vmatprep.subr.mxu0 0.0
    %1627 = vmatpush1.msra.mxu0 0.0
    %1628 = vmatprep.subr.mxu0 0.0
    %1629 = vmatpush1.msra.mxu0 0.0
    %1630 = vmatprep.subr.mxu0 0.0
    %1631 = vmatpush1.msra.mxu0 0.0
    %1632 = vmatprep.subr.mxu0 0.0
    %1633 = vmatpush1.msra.mxu0 0.0
    %1634 = vmatprep.subr.mxu0 0.0
    %1635 = vmatpush1.msra.mxu0 0.0
    %1636 = vmatprep.subr.mxu0 0.0
    %1637 = vmatpush1.msra.mxu0 0.0
    %1638 = vmatprep.subr.mxu0 0.0
    %1639 = vmatpush1.msra.mxu0 0.0
    %1640 = vmatprep.subr.mxu0 0.0
    %1641 = vmatpush1.msra.mxu0 0.0
    %1642 = vmatprep.subr.mxu0 0.0
    %1643 = vmatpush1.msra.mxu0 0.0
    %1644 = vmatprep.subr.mxu0 0.0
    %1645 = vmatpush1.msra.mxu0 0.0
    %1646 = vmatprep.subr.mxu0 0.0
    %1647 = vmatpush1.msra.mxu0 0.0
    %1648 = vmatprep.subr.mxu0 0.0
    %1649 = vmatpush1.msra.mxu0 0.0
    %1650 = vmatprep.subr.mxu0 0.0
    %1651 = vmatpush1.msra.mxu0 0.0
    %1652 = vmatprep.subr.mxu0 0.0
    %1653 = vmatpush1.msra.mxu0 0.0
    %1654 = vmatprep.subr.mxu0 0.0
    %1655 = vmatpush1.msra.mxu0 0.0
    %1656 = vmatprep.subr.mxu0 0.0
    %1657 = vmatpush1.msra.mxu0 0.0
    %1658 = vmatprep.subr.mxu0 0.0
    %1659 = vmatpush1.msra.mxu0 0.0
    %1660 = vmatprep.subr.mxu0 0.0
    %1661 = vmatpush1.msra.mxu0 0.0
    %1662 = vmatprep.subr.mxu0 0.0
    %1663 = vmatpush1.msra.mxu0 0.0
    %1664 = vmatprep.mubr.f32.mxu0 0.0
    %1665 = vmatmul.mubr.f32.gmra.mrb[0].mxu0 %v1595
    %v1666 = vpop.f32.mrb[0].mxu0
    %v1667 = vadd.f32 0.0, %v1666
    %v1668 = vpop.f32.mrb[0].mxu0
    %1669 = vdwg.mxu0
    %v1670 = vlaneseq
    %v1671 = vshrl.u32 %v1670, 7
    %v1672 = vsub.s32 0, %v1671
    %v1673 = vrot.slane %v469, %v1672
    %v1674 = vlaneseq
    %v1675 = vshrl.u32 %v1674, 7
    %v1676 = vsub.s32 0, %v1675
    %v1677 = vrot.slane %v576, %v1676
    %v1678 = vlaneseq
    %v1679 = vshrl.u32 %v1678, 7
    %v1680 = vsub.s32 0, %v1679
    %v1681 = vrot.slane %v683, %v1680
    %v1682 = vlaneseq
    %v1683 = vshrl.u32 %v1682, 7
    %v1684 = vsub.s32 0, %v1683
    %v1685 = vrot.slane %v790, %v1684
    %v1686 = vlaneseq
    %v1687 = vshrl.u32 %v1686, 7
    %v1688 = vsub.s32 0, %v1687
    %v1689 = vrot.slane %v897, %v1688
    %v1690 = vlaneseq
    %v1691 = vshrl.u32 %v1690, 7
    %v1692 = vsub.s32 0, %v1691
    %v1693 = vrot.slane %v1004, %v1692
    %v1694 = vlaneseq
    %v1695 = vshrl.u32 %v1694, 7
    %v1696 = vsub.s32 0, %v1695
    %v1697 = vrot.slane %v1111, %v1696
    %v1698 = vlaneseq
    %v1699 = vshrl.u32 %v1698, 7
    %v1700 = vsub.s32 0, %v1699
    %v1701 = vrot.slane %v1218, %v1700
    %v1702 = vsel %vm1459, %v1677, %v1673
    %v1703 = vsel %vm1461, %v1681, %v1702
    %v1704 = vsel %vm1463, %v1685, %v1703
    %v1705 = vsel %vm1465, %v1689, %v1704
    %v1706 = vsel %vm1467, %v1693, %v1705
    %v1707 = vsel %vm1469, %v1697, %v1706
    %v1708 = vsel %vm1471, %v1701, %v1707
    %1709 = vrot.lane.b32.xlu0 %v1708, 64
    %v1710 = vpop.permute.xlu0 %1709
    %v1711 = vsel %vm360, %v1710, 0
    %1713 = vmatprep.subr.mxu0 0.0
    %1714 = vmatpush1.msra.mxu0 %v1417
    %1715 = vmatprep.subr.mxu0 0.0
    %1716 = vmatpush1.msra.mxu0 %v1418
    %1717 = vmatprep.subr.mxu0 0.0
    %1718 = vmatpush1.msra.mxu0 %v1419
    %1719 = vmatprep.subr.mxu0 0.0
    %1720 = vmatpush1.msra.mxu0 %v1420
    %1721 = vmatprep.subr.mxu0 0.0
    %1722 = vmatpush1.msra.mxu0 0.0
    %1723 = vmatprep.subr.mxu0 0.0
    %1724 = vmatpush1.msra.mxu0 0.0
    %1725 = vmatprep.subr.mxu0 0.0
    %1726 = vmatpush1.msra.mxu0 0.0
    %1727 = vmatprep.subr.mxu0 0.0
    %1728 = vmatpush1.msra.mxu0 0.0
    %1729 = vmatprep.subr.mxu0 0.0
    %1730 = vmatpush1.msra.mxu0 0.0
    %1731 = vmatprep.subr.mxu0 0.0
    %1732 = vmatpush1.msra.mxu0 0.0
    %1733 = vmatprep.subr.mxu0 0.0
    %1734 = vmatpush1.msra.mxu0 0.0
    %1735 = vmatprep.subr.mxu0 0.0
    %1736 = vmatpush1.msra.mxu0 0.0
    %1737 = vmatprep.subr.mxu0 0.0
    %1738 = vmatpush1.msra.mxu0 0.0
    %1739 = vmatprep.subr.mxu0 0.0
    %1740 = vmatpush1.msra.mxu0 0.0
    %1741 = vmatprep.subr.mxu0 0.0
    %1742 = vmatpush1.msra.mxu0 0.0
    %1743 = vmatprep.subr.mxu0 0.0
    %1744 = vmatpush1.msra.mxu0 0.0
    %1745 = vmatprep.subr.mxu0 0.0
    %1746 = vmatpush1.msra.mxu0 0.0
    %1747 = vmatprep.subr.mxu0 0.0
    %1748 = vmatpush1.msra.mxu0 0.0
    %1749 = vmatprep.subr.mxu0 0.0
    %1750 = vmatpush1.msra.mxu0 0.0
    %1751 = vmatprep.subr.mxu0 0.0
    %1752 = vmatpush1.msra.mxu0 0.0
    %1753 = vmatprep.subr.mxu0 0.0
    %1754 = vmatpush1.msra.mxu0 0.0
    %1755 = vmatprep.subr.mxu0 0.0
    %1756 = vmatpush1.msra.mxu0 0.0
    %1757 = vmatprep.subr.mxu0 0.0
    %1758 = vmatpush1.msra.mxu0 0.0
    %1759 = vmatprep.subr.mxu0 0.0
    %1760 = vmatpush1.msra.mxu0 0.0
    %1761 = vmatprep.subr.mxu0 0.0
    %1762 = vmatpush1.msra.mxu0 0.0
    %1763 = vmatprep.subr.mxu0 0.0
    %1764 = vmatpush1.msra.mxu0 0.0
    %1765 = vmatprep.subr.mxu0 0.0
    %1766 = vmatpush1.msra.mxu0 0.0
    %1767 = vmatprep.subr.mxu0 0.0
    %1768 = vmatpush1.msra.mxu0 0.0
    %1769 = vmatprep.subr.mxu0 0.0
    %1770 = vmatpush1.msra.mxu0 0.0
    %1771 = vmatprep.subr.mxu0 0.0
    %1772 = vmatpush1.msra.mxu0 0.0
    %1773 = vmatprep.subr.mxu0 0.0
    %1774 = vmatpush1.msra.mxu0 0.0
    %1775 = vmatprep.subr.mxu0 0.0
    %1776 = vmatpush1.msra.mxu0 0.0
    %1777 = vmatprep.mubr.f32.mxu0 0.0
    %1778 = vmatmul.mubr.f32.gmra.mrb[0].mxu0 %v1711
    %v1779 = vpop.f32.mrb[0].mxu0
    %v1780 = vadd.f32 0.0, %v1779
    %v1781 = vpop.f32.mrb[0].mxu0
    %1782 = vdwg.mxu0
    %v1784 = vsel %vm360, %v1667, 0
    %1786 = vmatprep.subr.mxu0 0.0
    %1787 = vmatpush1.msra.mxu0 %v1413
    %1788 = vmatprep.subr.mxu0 0.0
    %1789 = vmatpush1.msra.mxu0 %v1414
    %1790 = vmatprep.subr.mxu0 0.0
    %1791 = vmatpush1.msra.mxu0 %v1415
    %1792 = vmatprep.subr.mxu0 0.0
    %1793 = vmatpush1.msra.mxu0 %v1416
    %1794 = vmatprep.subr.mxu0 0.0
    %1795 = vmatpush1.msra.mxu0 0.0
    %1796 = vmatprep.subr.mxu0 0.0
    %1797 = vmatpush1.msra.mxu0 0.0
    %1798 = vmatprep.subr.mxu0 0.0
    %1799 = vmatpush1.msra.mxu0 0.0
    %1800 = vmatprep.subr.mxu0 0.0
    %1801 = vmatpush1.msra.mxu0 0.0
    %1802 = vmatprep.subr.mxu0 0.0
    %1803 = vmatpush1.msra.mxu0 0.0
    %1804 = vmatprep.subr.mxu0 0.0
    %1805 = vmatpush1.msra.mxu0 0.0
    %1806 = vmatprep.subr.mxu0 0.0
    %1807 = vmatpush1.msra.mxu0 0.0
    %1808 = vmatprep.subr.mxu0 0.0
    %1809 = vmatpush1.msra.mxu0 0.0
    %1810 = vmatprep.subr.mxu0 0.0
    %1811 = vmatpush1.msra.mxu0 0.0
    %1812 = vmatprep.subr.mxu0 0.0
    %1813 = vmatpush1.msra.mxu0 0.0
    %1814 = vmatprep.subr.mxu0 0.0
    %1815 = vmatpush1.msra.mxu0 0.0
    %1816 = vmatprep.subr.mxu0 0.0
    %1817 = vmatpush1.msra.mxu0 0.0
    %1818 = vmatprep.subr.mxu0 0.0
    %1819 = vmatpush1.msra.mxu0 0.0
    %1820 = vmatprep.subr.mxu0 0.0
    %1821 = vmatpush1.msra.mxu0 0.0
    %1822 = vmatprep.subr.mxu0 0.0
    %1823 = vmatpush1.msra.mxu0 0.0
    %1824 = vmatprep.subr.mxu0 0.0
    %1825 = vmatpush1.msra.mxu0 0.0
    %1826 = vmatprep.subr.mxu0 0.0
    %1827 = vmatpush1.msra.mxu0 0.0
    %1828 = vmatprep.subr.mxu0 0.0
    %1829 = vmatpush1.msra.mxu0 0.0
    %1830 = vmatprep.subr.mxu0 0.0
    %1831 = vmatpush1.msra.mxu0 0.0
    %1832 = vmatprep.subr.mxu0 0.0
    %1833 = vmatpush1.msra.mxu0 0.0
    %1834 = vmatprep.subr.mxu0 0.0
    %1835 = vmatpush1.msra.mxu0 0.0
    %1836 = vmatprep.subr.mxu0 0.0
    %1837 = vmatpush1.msra.mxu0 0.0
    %1838 = vmatprep.subr.mxu0 0.0
    %1839 = vmatpush1.msra.mxu0 0.0
    %1840 = vmatprep.subr.mxu0 0.0
    %1841 = vmatpush1.msra.mxu0 0.0
    %1842 = vmatprep.subr.mxu0 0.0
    %1843 = vmatpush1.msra.mxu0 0.0
    %1844 = vmatprep.subr.mxu0 0.0
    %1845 = vmatpush1.msra.mxu0 0.0
    %1846 = vmatprep.subr.mxu0 0.0
    %1847 = vmatpush1.msra.mxu0 0.0
    %1848 = vmatprep.subr.mxu0 0.0
    %1849 = vmatpush1.msra.mxu0 0.0
    %1850 = vmatprep.mubr.f32.mxu0 0.0
    %1851 = vmatmul.mubr.f32.gmra.mrb[0].mxu0 %v1784
    %v1852 = vpop.f32.mrb[0].mxu0
    %v1853 = vadd.f32 %v1780, %v1852
    %v1854 = vpop.f32.mrb[0].mxu0
    %1855 = vdwg.mxu0
    %v1856 = vtanh.pop %v1853
    %v1858 = vcombine.high %v1856, %v1856
    %v1860 = vunpack.c.l.s4 1966171168
    %v1861 = vunpack.c.0.s8 %v1860
    %v1862 = vlaneseq
    %v1863 = vshrl.u32 %v1862, 7
    %v1864 = vsub.s32 %v1861, %v1863
    %v1865 = vrot.slane %v1856, %v1864
    %v1867 = vunpack.c.l.s4 1966171168
    %v1868 = vunpack.c.0.s8 %v1867
    %v1869 = vlaneseq
    %v1870 = vshrl.u32 %v1869, 7
    %v1871 = vsub.s32 %v1868, %v1870
    %v1872 = vrot.slane %v1858, %v1871
    %v1873 = vcombine.high %v1865, %v1865
    %v1874 = vcombine.high %v1872, %v1872
    %v1876 = vunpack.c.l.s4 1966171168
    %v1877 = vunpack.c.0.s8 %v1876
    %v1878 = vlaneseq
    %v1879 = vshrl.u32 %v1878, 7
    %v1880 = vsub.s32 %v1877, %v1879
    %v1881 = vrot.slane %v1865, %v1880
    %v1883 = vunpack.c.l.s4 1966171168
    %v1884 = vunpack.c.0.s8 %v1883
    %v1885 = vlaneseq
    %v1886 = vshrl.u32 %v1885, 7
    %v1887 = vsub.s32 %v1884, %v1886
    %v1888 = vrot.slane %v1872, %v1887
    %v1890 = vunpack.c.l.s4 1966171168
    %v1891 = vunpack.c.0.s8 %v1890
    %v1892 = vlaneseq
    %v1893 = vshrl.u32 %v1892, 7
    %v1894 = vsub.s32 %v1891, %v1893
    %v1895 = vrot.slane %v1873, %v1894
    %v1897 = vunpack.c.l.s4 1966171168
    %v1898 = vunpack.c.0.s8 %v1897
    %v1899 = vlaneseq
    %v1900 = vshrl.u32 %v1899, 7
    %v1901 = vsub.s32 %v1898, %v1900
    %v1902 = vrot.slane %v1874, %v1901
    %v1903 = vcombine.high %v1881, %v1881
    %v1904 = vcombine.high %v1888, %v1888
    %v1905 = vcombine.high %v1895, %v1895
    %v1906 = vcombine.high %v1902, %v1902
    %vm1915 = vcmask 253952
    %1916 = vst.msk [vmem:[#allocation12] sm:$0x1] %vm1915, %v1881
    %1917 = vst.msk [vmem:[#allocation12 + $0x2] sm:$0x1] %vm1915, %v1895
    %1918 = vst.msk [vmem:[#allocation12 + $0x4] sm:$0x1] %vm1915, %v1903
    %1919 = vst.msk [vmem:[#allocation12 + $0x6] sm:$0x1] %vm1915, %v1905
    %1920 = vst.msk [vmem:[#allocation12 + $0x8] sm:$0x1] %vm1915, %v1888
    %1921 = vst.msk [vmem:[#allocation12 + $0xa] sm:$0x1] %vm1915, %v1902
    %1922 = vst.msk [vmem:[#allocation12 + $0xc] sm:$0x1] %vm1915, %v1904
    %1923 = vst.msk [vmem:[#allocation12 + $0xe] sm:$0x1] %vm1915, %v1906
    %v1924 = vcombine.high %v1592, %v1592
    %v1926 = vunpack.c.l.s4 1966171168
    %v1927 = vunpack.c.0.s8 %v1926
    %v1928 = vlaneseq
    %v1929 = vshrl.u32 %v1928, 7
    %v1930 = vsub.s32 %v1927, %v1929
    %v1931 = vrot.slane %v1592, %v1930
    %v1933 = vunpack.c.l.s4 1966171168
    %v1934 = vunpack.c.0.s8 %v1933
    %v1935 = vlaneseq
    %v1936 = vshrl.u32 %v1935, 7
    %v1937 = vsub.s32 %v1934, %v1936
    %v1938 = vrot.slane %v1924, %v1937
    %v1939 = vcombine.high %v1931, %v1931
    %v1940 = vcombine.high %v1938, %v1938
    %v1942 = vunpack.c.l.s4 1966171168
    %v1943 = vunpack.c.0.s8 %v1942
    %v1944 = vlaneseq
    %v1945 = vshrl.u32 %v1944, 7
    %v1946 = vsub.s32 %v1943, %v1945
    %v1947 = vrot.slane %v1931, %v1946
    %v1949 = vunpack.c.l.s4 1966171168
    %v1950 = vunpack.c.0.s8 %v1949
    %v1951 = vlaneseq
    %v1952 = vshrl.u32 %v1951, 7
    %v1953 = vsub.s32 %v1950, %v1952
    %v1954 = vrot.slane %v1938, %v1953
    %v1956 = vunpack.c.l.s4 1966171168
    %v1957 = vunpack.c.0.s8 %v1956
    %v1958 = vlaneseq
    %v1959 = vshrl.u32 %v1958, 7
    %v1960 = vsub.s32 %v1957, %v1959
    %v1961 = vrot.slane %v1939, %v1960
    %v1963 = vunpack.c.l.s4 1966171168
    %v1964 = vunpack.c.0.s8 %v1963
    %v1965 = vlaneseq
    %v1966 = vshrl.u32 %v1965, 7
    %v1967 = vsub.s32 %v1964, %v1966
    %v1968 = vrot.slane %v1940, %v1967
    %v1969 = vcombine.high %v1947, %v1947
    %v1970 = vcombine.high %v1954, %v1954
    %v1971 = vcombine.high %v1961, %v1961
    %v1972 = vcombine.high %v1968, %v1968
    %vm1981 = vcmask 90112
    %1982 = vst.msk [vmem:[#allocation13] sm:$0x1] %vm1981, %v1947
    %1983 = vst.msk [vmem:[#allocation13 + $0x2] sm:$0x1] %vm1981, %v1961
    %1984 = vst.msk [vmem:[#allocation13 + $0x4] sm:$0x1] %vm1981, %v1969
    %1985 = vst.msk [vmem:[#allocation13 + $0x6] sm:$0x1] %vm1981, %v1971
    %1986 = vst.msk [vmem:[#allocation13 + $0x8] sm:$0x1] %vm1981, %v1954
    %1987 = vst.msk [vmem:[#allocation13 + $0xa] sm:$0x1] %vm1981, %v1968
    %1988 = vst.msk [vmem:[#allocation13 + $0xc] sm:$0x1] %vm1981, %v1970
    %1989 = vst.msk [vmem:[#allocation13 + $0xe] sm:$0x1] %vm1981, %v1972
    %s1990 = sld [smem:[#allocation2 + $0x1]]
    %v1991 = vstv %s1990
    %vm1992 = vcmp.ge.s32.totalorder %v113, %v1991
    %v1993 = vsel %vm1992, 1, 0
    %v1994 = vcvt.s32.f32 %v1993
    %v1995 = vmul.f32 %v1994, -1e+30
    %v1996 = vlaneseq
    %v1997 = vshrl.u32 %v1996, 7
    %v1998 = vsub.s32 1, %v1997
    %v1999 = vrot.slane %v1374, %v1998
    %v2000 = vlaneseq
    %v2001 = vshrl.u32 %v2000, 7
    %v2002 = vsub.s32 1, %v2001
    %v2003 = vrot.slane %v1382, %v2002
    %v2004 = vlaneseq
    %v2005 = vshrl.u32 %v2004, 7
    %v2006 = vsub.s32 1, %v2005
    %v2007 = vrot.slane %v1381, %v2006
    %v2008 = vlaneseq
    %v2009 = vshrl.u32 %v2008, 7
    %v2010 = vsub.s32 1, %v2009
    %v2011 = vrot.slane %v1383, %v2010
    %v2012 = vlaneseq
    %v2013 = vshrl.u32 %v2012, 7
    %v2014 = vsub.s32 1, %v2013
    %v2015 = vrot.slane %v1391, %v2014
    %v2016 = vlaneseq
    %v2017 = vshrl.u32 %v2016, 7
    %v2018 = vsub.s32 1, %v2017
    %v2019 = vrot.slane %v1399, %v2018
    %v2020 = vlaneseq
    %v2021 = vshrl.u32 %v2020, 7
    %v2022 = vsub.s32 1, %v2021
    %v2023 = vrot.slane %v1398, %v2022
    %v2024 = vlaneseq
    %v2025 = vshrl.u32 %v2024, 7
    %v2026 = vsub.s32 1, %v2025
    %v2027 = vrot.slane %v1400, %v2026
    %v2028 = vsel %vm1459, %v2003, %v1999
    %v2029 = vsel %vm1461, %v2007, %v2028
    %v2030 = vsel %vm1463, %v2011, %v2029
    %v2031 = vsel %vm1465, %v2015, %v2030
    %v2032 = vsel %vm1467, %v2019, %v2031
    %v2033 = vsel %vm1469, %v2023, %v2032
    %v2034 = vsel %vm1471, %v2027, %v2033
    %v2035 = vrot.slane %v1401, 1
    %v2036 = vsel %vm1459, %v1402, %v2035
    %v2037 = vrot.slane %v1403, 7
    %v2038 = vsel %vm1461, %v2037, %v2036
    %v2039 = vrot.slane %v1404, 6
    %v2040 = vsel %vm1463, %v2039, %v2038
    %v2041 = vrot.slane %v1405, 5
    %v2042 = vsel %vm1465, %v2041, %v2040
    %v2043 = vrot.slane %v1406, 4
    %v2044 = vsel %vm1467, %v2043, %v2042
    %v2045 = vrot.slane %v1407, 3
    %v2046 = vsel %vm1469, %v2045, %v2044
    %v2047 = vrot.slane %v1408, 2
    %v2048 = vsel %vm1471, %v2047, %v2046
    %v2049 = vrot.slane %v1409, 1
    %v2050 = vsel %vm1459, %v1410, %v2049
    %v2051 = vrot.slane %v1411, 7
    %v2052 = vsel %vm1461, %v2051, %v2050
    %v2053 = vrot.slane %v1412, 6
    %v2054 = vsel %vm1463, %v2053, %v2052
    %v2055 = vsel %vm360, %v2034, 0
    %v2057 = vsel %vm360, %v2048, 0
    %v2059 = vsel %vm360, %v2054, 0
    %2061 = vmatprep.subr.mxu0 0.0
    %2062 = vmatpush1.xpose.msra.mxu0 %v2057
    %2063 = vmatprep.subr.mxu0 0.0
    %2064 = vmatpush1.xpose.msra.mxu0 %v2059
    %2065 = vmatprep.subr.mxu0 0.0
    %2066 = vmatpush1.xpose.msra.mxu0 0.0
    %2067 = vmatprep.subr.mxu0 0.0
    %2068 = vmatpush1.xpose.msra.mxu0 0.0
    %2069 = vmatprep.subr.mxu0 0.0
    %2070 = vmatpush1.xpose.msra.mxu0 0.0
    %2071 = vmatprep.subr.mxu0 0.0
    %2072 = vmatpush1.xpose.msra.mxu0 0.0
    %2073 = vmatprep.subr.mxu0 0.0
    %2074 = vmatpush1.xpose.msra.mxu0 0.0
    %2075 = vmatprep.subr.mxu0 0.0
    %2076 = vmatpush1.xpose.msra.mxu0 0.0
    %2077 = vmatprep.subr.mxu0 0.0
    %2078 = vmatpush1.xpose.msra.mxu0 0.0
    %2079 = vmatprep.subr.mxu0 0.0
    %2080 = vmatpush1.xpose.msra.mxu0 0.0
    %2081 = vmatprep.subr.mxu0 0.0
    %2082 = vmatpush1.xpose.msra.mxu0 0.0
    %2083 = vmatprep.subr.mxu0 0.0
    %2084 = vmatpush1.xpose.msra.mxu0 0.0
    %2085 = vmatprep.subr.mxu0 0.0
    %2086 = vmatpush1.xpose.msra.mxu0 0.0
    %2087 = vmatprep.subr.mxu0 0.0
    %2088 = vmatpush1.xpose.msra.mxu0 0.0
    %2089 = vmatprep.subr.mxu0 0.0
    %2090 = vmatpush1.xpose.msra.mxu0 0.0
    %2091 = vmatprep.subr.mxu0 0.0
    %2092 = vmatpush1.xpose.msra.mxu0 0.0
    %2093 = vmatprep.subr.mxu0 0.0
    %2094 = vmatpush1.xpose.msra.mxu0 0.0
    %2095 = vmatprep.subr.mxu0 0.0
    %2096 = vmatpush1.xpose.msra.mxu0 0.0
    %2097 = vmatprep.subr.mxu0 0.0
    %2098 = vmatpush1.xpose.msra.mxu0 0.0
    %2099 = vmatprep.subr.mxu0 0.0
    %2100 = vmatpush1.xpose.msra.mxu0 0.0
    %2101 = vmatprep.subr.mxu0 0.0
    %2102 = vmatpush1.xpose.msra.mxu0 0.0
    %2103 = vmatprep.subr.mxu0 0.0
    %2104 = vmatpush1.xpose.msra.mxu0 0.0
    %2105 = vmatprep.subr.mxu0 0.0
    %2106 = vmatpush1.xpose.msra.mxu0 0.0
    %2107 = vmatprep.subr.mxu0 0.0
    %2108 = vmatpush1.xpose.msra.mxu0 0.0
    %2109 = vmatprep.subr.mxu0 0.0
    %2110 = vmatpush1.xpose.msra.mxu0 0.0
    %2111 = vmatprep.subr.mxu0 0.0
    %2112 = vmatpush1.xpose.msra.mxu0 0.0
    %2113 = vmatprep.subr.mxu0 0.0
    %2114 = vmatpush1.xpose.msra.mxu0 0.0
    %2115 = vmatprep.subr.mxu0 0.0
    %2116 = vmatpush1.xpose.msra.mxu0 0.0
    %2117 = vmatprep.subr.mxu0 0.0
    %2118 = vmatpush1.xpose.msra.mxu0 0.0
    %2119 = vmatprep.subr.mxu0 0.0
    %2120 = vmatpush1.xpose.msra.mxu0 0.0
    %2121 = vmatprep.subr.mxu0 0.0
    %2122 = vmatpush1.xpose.msra.mxu0 0.0
    %2123 = vmatprep.subr.mxu0 0.0
    %2124 = vmatpush1.xpose.msra.mxu0 0.0
    %2125 = vmatprep.mubr.f32.mxu0 0.0
    %2126 = vmatmul.mubr.f32.gmra.mrb[0].mxu0 %v2055
    %v2127 = vpop.f32.mrb[0].mxu0
    %v2128 = vadd.f32 %v1995, %v2127
    %v2129 = vpop.f32.mrb[0].mxu0
    %2130 = vdwg.mxu0
    %v2131 = vsel %vm1581, %v2128, -inf
    %2132 = vmax.xlane.f32.xlu0 %v2131
    %v2133 = vpop.xlane.xlu0 %2132
    %v2134 = vsub.f32 %v2128, %v2133
    %v2135 = vmul.f32 %v2134, 1.442695
    %v2136 = vpow.pop %v2135
    %v2137 = vsel %vm1581, %v2136, 0.0
    %2138 = vadd.xlane.f32.xlu0 %v2137
    %v2139 = vpop.xlane.xlu0 %2138
    %v2140 = vrcp.pop %v2139
    %v2141 = vmul.f32 %v2136, %v2140
    %v2144 = vsel %vm1581, %v2141, 0
    %v2146 = vsel %vm1597, %v2054, 0
    %2148 = vmatprep.subr.mxu0 0.0
    %2149 = vmatpush1.msra.mxu0 %v2048
    %2150 = vmatprep.subr.mxu0 0.0
    %2151 = vmatpush1.msra.mxu0 %v2146
    %2152 = vmatprep.subr.mxu0 0.0
    %2153 = vmatpush1.msra.mxu0 0.0
    %2154 = vmatprep.subr.mxu0 0.0
    %2155 = vmatpush1.msra.mxu0 0.0
    %2156 = vmatprep.subr.mxu0 0.0
    %2157 = vmatpush1.msra.mxu0 0.0
    %2158 = vmatprep.subr.mxu0 0.0
    %2159 = vmatpush1.msra.mxu0 0.0
    %2160 = vmatprep.subr.mxu0 0.0
    %2161 = vmatpush1.msra.mxu0 0.0
    %2162 = vmatprep.subr.mxu0 0.0
    %2163 = vmatpush1.msra.mxu0 0.0
    %2164 = vmatprep.subr.mxu0 0.0
    %2165 = vmatpush1.msra.mxu0 0.0
    %2166 = vmatprep.subr.mxu0 0.0
    %2167 = vmatpush1.msra.mxu0 0.0
    %2168 = vmatprep.subr.mxu0 0.0
    %2169 = vmatpush1.msra.mxu0 0.0
    %2170 = vmatprep.subr.mxu0 0.0
    %2171 = vmatpush1.msra.mxu0 0.0
    %2172 = vmatprep.subr.mxu0 0.0
    %2173 = vmatpush1.msra.mxu0 0.0
    %2174 = vmatprep.subr.mxu0 0.0
    %2175 = vmatpush1.msra.mxu0 0.0
    %2176 = vmatprep.subr.mxu0 0.0
    %2177 = vmatpush1.msra.mxu0 0.0
    %2178 = vmatprep.subr.mxu0 0.0
    %2179 = vmatpush1.msra.mxu0 0.0
    %2180 = vmatprep.subr.mxu0 0.0
    %2181 = vmatpush1.msra.mxu0 0.0
    %2182 = vmatprep.subr.mxu0 0.0
    %2183 = vmatpush1.msra.mxu0 0.0
    %2184 = vmatprep.subr.mxu0 0.0
    %2185 = vmatpush1.msra.mxu0 0.0
    %2186 = vmatprep.subr.mxu0 0.0
    %2187 = vmatpush1.msra.mxu0 0.0
    %2188 = vmatprep.subr.mxu0 0.0
    %2189 = vmatpush1.msra.mxu0 0.0
    %2190 = vmatprep.subr.mxu0 0.0
    %2191 = vmatpush1.msra.mxu0 0.0
    %2192 = vmatprep.subr.mxu0 0.0
    %2193 = vmatpush1.msra.mxu0 0.0
    %2194 = vmatprep.subr.mxu0 0.0
    %2195 = vmatpush1.msra.mxu0 0.0
    %2196 = vmatprep.subr.mxu0 0.0
    %2197 = vmatpush1.msra.mxu0 0.0
    %2198 = vmatprep.subr.mxu0 0.0
    %2199 = vmatpush1.msra.mxu0 0.0
    %2200 = vmatprep.subr.mxu0 0.0
    %2201 = vmatpush1.msra.mxu0 0.0
    %2202 = vmatprep.subr.mxu0 0.0
    %2203 = vmatpush1.msra.mxu0 0.0
    %2204 = vmatprep.subr.mxu0 0.0
    %2205 = vmatpush1.msra.mxu0 0.0
    %2206 = vmatprep.subr.mxu0 0.0
    %2207 = vmatpush1.msra.mxu0 0.0
    %2208 = vmatprep.subr.mxu0 0.0
    %2209 = vmatpush1.msra.mxu0 0.0
    %2210 = vmatprep.subr.mxu0 0.0
    %2211 = vmatpush1.msra.mxu0 0.0
    %2212 = vmatprep.mubr.f32.mxu0 0.0
    %2213 = vmatmul.mubr.f32.gmra.mrb[0].mxu0 %v2144
    %v2214 = vpop.f32.mrb[0].mxu0
    %v2215 = vadd.f32 0.0, %v2214
    %v2216 = vpop.f32.mrb[0].mxu0
    %2217 = vdwg.mxu0
    %v2218 = vlaneseq
    %v2219 = vshrl.u32 %v2218, 7
    %v2220 = vsub.s32 1, %v2219
    %v2221 = vrot.slane %v469, %v2220
    %v2222 = vlaneseq
    %v2223 = vshrl.u32 %v2222, 7
    %v2224 = vsub.s32 1, %v2223
    %v2225 = vrot.slane %v576, %v2224
    %v2226 = vlaneseq
    %v2227 = vshrl.u32 %v2226, 7
    %v2228 = vsub.s32 1, %v2227
    %v2229 = vrot.slane %v683, %v2228
    %v2230 = vlaneseq
    %v2231 = vshrl.u32 %v2230, 7
    %v2232 = vsub.s32 1, %v2231
    %v2233 = vrot.slane %v790, %v2232
    %v2234 = vlaneseq
    %v2235 = vshrl.u32 %v2234, 7
    %v2236 = vsub.s32 1, %v2235
    %v2237 = vrot.slane %v897, %v2236
    %v2238 = vlaneseq
    %v2239 = vshrl.u32 %v2238, 7
    %v2240 = vsub.s32 1, %v2239
    %v2241 = vrot.slane %v1004, %v2240
    %v2242 = vlaneseq
    %v2243 = vshrl.u32 %v2242, 7
    %v2244 = vsub.s32 1, %v2243
    %v2245 = vrot.slane %v1111, %v2244
    %v2246 = vlaneseq
    %v2247 = vshrl.u32 %v2246, 7
    %v2248 = vsub.s32 1, %v2247
    %v2249 = vrot.slane %v1218, %v2248
    %v2250 = vsel %vm1459, %v2225, %v2221
    %v2251 = vsel %vm1461, %v2229, %v2250
    %v2252 = vsel %vm1463, %v2233, %v2251
    %v2253 = vsel %vm1465, %v2237, %v2252
    %v2254 = vsel %vm1467, %v2241, %v2253
    %v2255 = vsel %vm1469, %v2245, %v2254
    %v2256 = vsel %vm1471, %v2249, %v2255
    %2257 = vrot.lane.b32.xlu0 %v2256, 64
    %v2258 = vpop.permute.xlu0 %2257
    %v2259 = vsel %vm360, %v2258, 0
    %2261 = vmatprep.subr.mxu0 0.0
    %2262 = vmatpush1.msra.mxu0 %v1417
    %2263 = vmatprep.subr.mxu0 0.0
    %2264 = vmatpush1.msra.mxu0 %v1418
    %2265 = vmatprep.subr.mxu0 0.0
    %2266 = vmatpush1.msra.mxu0 %v1419
    %2267 = vmatprep.subr.mxu0 0.0
    %2268 = vmatpush1.msra.mxu0 %v1420
    %2269 = vmatprep.subr.mxu0 0.0
    %2270 = vmatpush1.msra.mxu0 0.0
    %2271 = vmatprep.subr.mxu0 0.0
    %2272 = vmatpush1.msra.mxu0 0.0
    %2273 = vmatprep.subr.mxu0 0.0
    %2274 = vmatpush1.msra.mxu0 0.0
    %2275 = vmatprep.subr.mxu0 0.0
    %2276 = vmatpush1.msra.mxu0 0.0
    %2277 = vmatprep.subr.mxu0 0.0
    %2278 = vmatpush1.msra.mxu0 0.0
    %2279 = vmatprep.subr.mxu0 0.0
    %2280 = vmatpush1.msra.mxu0 0.0
    %2281 = vmatprep.subr.mxu0 0.0
    %2282 = vmatpush1.msra.mxu0 0.0
    %2283 = vmatprep.subr.mxu0 0.0
    %2284 = vmatpush1.msra.mxu0 0.0
    %2285 = vmatprep.subr.mxu0 0.0
    %2286 = vmatpush1.msra.mxu0 0.0
    %2287 = vmatprep.subr.mxu0 0.0
    %2288 = vmatpush1.msra.mxu0 0.0
    %2289 = vmatprep.subr.mxu0 0.0
    %2290 = vmatpush1.msra.mxu0 0.0
    %2291 = vmatprep.subr.mxu0 0.0
    %2292 = vmatpush1.msra.mxu0 0.0
    %2293 = vmatprep.subr.mxu0 0.0
    %2294 = vmatpush1.msra.mxu0 0.0
    %2295 = vmatprep.subr.mxu0 0.0
    %2296 = vmatpush1.msra.mxu0 0.0
    %2297 = vmatprep.subr.mxu0 0.0
    %2298 = vmatpush1.msra.mxu0 0.0
    %2299 = vmatprep.subr.mxu0 0.0
    %2300 = vmatpush1.msra.mxu0 0.0
    %2301 = vmatprep.subr.mxu0 0.0
    %2302 = vmatpush1.msra.mxu0 0.0
    %2303 = vmatprep.subr.mxu0 0.0
    %2304 = vmatpush1.msra.mxu0 0.0
    %2305 = vmatprep.subr.mxu0 0.0
    %2306 = vmatpush1.msra.mxu0 0.0
    %2307 = vmatprep.subr.mxu0 0.0
    %2308 = vmatpush1.msra.mxu0 0.0
    %2309 = vmatprep.subr.mxu0 0.0
    %2310 = vmatpush1.msra.mxu0 0.0
    %2311 = vmatprep.subr.mxu0 0.0
    %2312 = vmatpush1.msra.mxu0 0.0
    %2313 = vmatprep.subr.mxu0 0.0
    %2314 = vmatpush1.msra.mxu0 0.0
    %2315 = vmatprep.subr.mxu0 0.0
    %2316 = vmatpush1.msra.mxu0 0.0
    %2317 = vmatprep.subr.mxu0 0.0
    %2318 = vmatpush1.msra.mxu0 0.0
    %2319 = vmatprep.subr.mxu0 0.0
    %2320 = vmatpush1.msra.mxu0 0.0
    %2321 = vmatprep.subr.mxu0 0.0
    %2322 = vmatpush1.msra.mxu0 0.0
    %2323 = vmatprep.subr.mxu0 0.0
    %2324 = vmatpush1.msra.mxu0 0.0
    %2325 = vmatprep.mubr.f32.mxu0 0.0
    %2326 = vmatmul.mubr.f32.gmra.mrb[0].mxu0 %v2259
    %v2327 = vpop.f32.mrb[0].mxu0
    %v2328 = vadd.f32 0.0, %v2327
    %v2329 = vpop.f32.mrb[0].mxu0
    %2330 = vdwg.mxu0
    %v2332 = vsel %vm360, %v2215, 0
    %2334 = vmatprep.subr.mxu0 0.0
    %2335 = vmatpush1.msra.mxu0 %v1413
    %2336 = vmatprep.subr.mxu0 0.0
    %2337 = vmatpush1.msra.mxu0 %v1414
    %2338 = vmatprep.subr.mxu0 0.0
    %2339 = vmatpush1.msra.mxu0 %v1415
    %2340 = vmatprep.subr.mxu0 0.0
    %2341 = vmatpush1.msra.mxu0 %v1416
    %2342 = vmatprep.subr.mxu0 0.0
    %2343 = vmatpush1.msra.mxu0 0.0
    %2344 = vmatprep.subr.mxu0 0.0
    %2345 = vmatpush1.msra.mxu0 0.0
    %2346 = vmatprep.subr.mxu0 0.0
    %2347 = vmatpush1.msra.mxu0 0.0
    %2348 = vmatprep.subr.mxu0 0.0
    %2349 = vmatpush1.msra.mxu0 0.0
    %2350 = vmatprep.subr.mxu0 0.0
    %2351 = vmatpush1.msra.mxu0 0.0
    %2352 = vmatprep.subr.mxu0 0.0
    %2353 = vmatpush1.msra.mxu0 0.0
    %2354 = vmatprep.subr.mxu0 0.0
    %2355 = vmatpush1.msra.mxu0 0.0
    %2356 = vmatprep.subr.mxu0 0.0
    %2357 = vmatpush1.msra.mxu0 0.0
    %2358 = vmatprep.subr.mxu0 0.0
    %2359 = vmatpush1.msra.mxu0 0.0
    %2360 = vmatprep.subr.mxu0 0.0
    %2361 = vmatpush1.msra.mxu0 0.0
    %2362 = vmatprep.subr.mxu0 0.0
    %2363 = vmatpush1.msra.mxu0 0.0
    %2364 = vmatprep.subr.mxu0 0.0
    %2365 = vmatpush1.msra.mxu0 0.0
    %2366 = vmatprep.subr.mxu0 0.0
    %2367 = vmatpush1.msra.mxu0 0.0
    %2368 = vmatprep.subr.mxu0 0.0
    %2369 = vmatpush1.msra.mxu0 0.0
    %2370 = vmatprep.subr.mxu0 0.0
    %2371 = vmatpush1.msra.mxu0 0.0
    %2372 = vmatprep.subr.mxu0 0.0
    %2373 = vmatpush1.msra.mxu0 0.0
    %2374 = vmatprep.subr.mxu0 0.0
    %2375 = vmatpush1.msra.mxu0 0.0
    %2376 = vmatprep.subr.mxu0 0.0
    %2377 = vmatpush1.msra.mxu0 0.0
    %2378 = vmatprep.subr.mxu0 0.0
    %2379 = vmatpush1.msra.mxu0 0.0
    %2380 = vmatprep.subr.mxu0 0.0
    %2381 = vmatpush1.msra.mxu0 0.0
    %2382 = vmatprep.subr.mxu0 0.0
    %2383 = vmatpush1.msra.mxu0 0.0
    %2384 = vmatprep.subr.mxu0 0.0
    %2385 = vmatpush1.msra.mxu0 0.0
    %2386 = vmatprep.subr.mxu0 0.0
    %2387 = vmatpush1.msra.mxu0 0.0
    %2388 = vmatprep.subr.mxu0 0.0
    %2389 = vmatpush1.msra.mxu0 0.0
    %2390 = vmatprep.subr.mxu0 0.0
    %2391 = vmatpush1.msra.mxu0 0.0
    %2392 = vmatprep.subr.mxu0 0.0
    %2393 = vmatpush1.msra.mxu0 0.0
    %2394 = vmatprep.subr.mxu0 0.0
    %2395 = vmatpush1.msra.mxu0 0.0
    %2396 = vmatprep.subr.mxu0 0.0
    %2397 = vmatpush1.msra.mxu0 0.0
    %2398 = vmatprep.mubr.f32.mxu0 0.0
    %2399 = vmatmul.mubr.f32.gmra.mrb[0].mxu0 %v2332
    %v2400 = vpop.f32.mrb[0].mxu0
    %v2401 = vadd.f32 %v2328, %v2400
    %v2402 = vpop.f32.mrb[0].mxu0
    %2403 = vdwg.mxu0
    %v2404 = vtanh.pop %v2401
    %v2406 = vcombine.high %v2404, %v2404
    %v2408 = vunpack.c.l.s4 1966171168
    %v2409 = vunpack.c.0.s8 %v2408
    %v2410 = vlaneseq
    %v2411 = vshrl.u32 %v2410, 7
    %v2412 = vsub.s32 %v2409, %v2411
    %v2413 = vrot.slane %v2404, %v2412
    %v2415 = vunpack.c.l.s4 1966171168
    %v2416 = vunpack.c.0.s8 %v2415
    %v2417 = vlaneseq
    %v2418 = vshrl.u32 %v2417, 7
    %v2419 = vsub.s32 %v2416, %v2418
    %v2420 = vrot.slane %v2406, %v2419
    %v2421 = vcombine.high %v2413, %v2413
    %v2422 = vcombine.high %v2420, %v2420
    %v2424 = vunpack.c.l.s4 1966171168
    %v2425 = vunpack.c.0.s8 %v2424
    %v2426 = vlaneseq
    %v2427 = vshrl.u32 %v2426, 7
    %v2428 = vsub.s32 %v2425, %v2427
    %v2429 = vrot.slane %v2413, %v2428
    %v2431 = vunpack.c.l.s4 1966171168
    %v2432 = vunpack.c.0.s8 %v2431
    %v2433 = vlaneseq
    %v2434 = vshrl.u32 %v2433, 7
    %v2435 = vsub.s32 %v2432, %v2434
    %v2436 = vrot.slane %v2420, %v2435
    %v2438 = vunpack.c.l.s4 1966171168
    %v2439 = vunpack.c.0.s8 %v2438
    %v2440 = vlaneseq
    %v2441 = vshrl.u32 %v2440, 7
    %v2442 = vsub.s32 %v2439, %v2441
    %v2443 = vrot.slane %v2421, %v2442
    %v2445 = vunpack.c.l.s4 1966171168
    %v2446 = vunpack.c.0.s8 %v2445
    %v2447 = vlaneseq
    %v2448 = vshrl.u32 %v2447, 7
    %v2449 = vsub.s32 %v2446, %v2448
    %v2450 = vrot.slane %v2422, %v2449
    %v2451 = vcombine.high %v2429, %v2429
    %v2452 = vcombine.high %v2436, %v2436
    %v2453 = vcombine.high %v2443, %v2443
    %v2454 = vcombine.high %v2450, %v2450
    %2463 = vst.msk [vmem:[#allocation12 + $0x1] sm:$0x1] %vm1915, %v2429
    %2464 = vst.msk [vmem:[#allocation12 + $0x3] sm:$0x1] %vm1915, %v2443
    %2465 = vst.msk [vmem:[#allocation12 + $0x5] sm:$0x1] %vm1915, %v2451
    %2466 = vst.msk [vmem:[#allocation12 + $0x7] sm:$0x1] %vm1915, %v2453
    %2467 = vst.msk [vmem:[#allocation12 + $0x9] sm:$0x1] %vm1915, %v2436
    %2468 = vst.msk [vmem:[#allocation12 + $0xb] sm:$0x1] %vm1915, %v2450
    %2469 = vst.msk [vmem:[#allocation12 + $0xd] sm:$0x1] %vm1915, %v2452
    %2470 = vst.msk [vmem:[#allocation12 + $0xf] sm:$0x1] %vm1915, %v2454
    %v2471 = vcombine.high %v2141, %v2141
    %v2473 = vunpack.c.l.s4 1966171168
    %v2474 = vunpack.c.0.s8 %v2473
    %v2475 = vlaneseq
    %v2476 = vshrl.u32 %v2475, 7
    %v2477 = vsub.s32 %v2474, %v2476
    %v2478 = vrot.slane %v2141, %v2477
    %v2480 = vunpack.c.l.s4 1966171168
    %v2481 = vunpack.c.0.s8 %v2480
    %v2482 = vlaneseq
    %v2483 = vshrl.u32 %v2482, 7
    %v2484 = vsub.s32 %v2481, %v2483
    %v2485 = vrot.slane %v2471, %v2484
    %v2486 = vcombine.high %v2478, %v2478
    %v2487 = vcombine.high %v2485, %v2485
    %v2489 = vunpack.c.l.s4 1966171168
    %v2490 = vunpack.c.0.s8 %v2489
    %v2491 = vlaneseq
    %v2492 = vshrl.u32 %v2491, 7
    %v2493 = vsub.s32 %v2490, %v2492
    %v2494 = vrot.slane %v2478, %v2493
    %v2496 = vunpack.c.l.s4 1966171168
    %v2497 = vunpack.c.0.s8 %v2496
    %v2498 = vlaneseq
    %v2499 = vshrl.u32 %v2498, 7
    %v2500 = vsub.s32 %v2497, %v2499
    %v2501 = vrot.slane %v2485, %v2500
    %v2503 = vunpack.c.l.s4 1966171168
    %v2504 = vunpack.c.0.s8 %v2503
    %v2505 = vlaneseq
    %v2506 = vshrl.u32 %v2505, 7
    %v2507 = vsub.s32 %v2504, %v2506
    %v2508 = vrot.slane %v2486, %v2507
    %v2510 = vunpack.c.l.s4 1966171168
    %v2511 = vunpack.c.0.s8 %v2510
    %v2512 = vlaneseq
    %v2513 = vshrl.u32 %v2512, 7
    %v2514 = vsub.s32 %v2511, %v2513
    %v2515 = vrot.slane %v2487, %v2514
    %v2516 = vcombine.high %v2494, %v2494
    %v2517 = vcombine.high %v2501, %v2501
    %v2518 = vcombine.high %v2508, %v2508
    %v2519 = vcombine.high %v2515, %v2515
    %2528 = vst.msk [vmem:[#allocation13 + $0x1] sm:$0x1] %vm1981, %v2494
    %2529 = vst.msk [vmem:[#allocation13 + $0x3] sm:$0x1] %vm1981, %v2508
    %2530 = vst.msk [vmem:[#allocation13 + $0x5] sm:$0x1] %vm1981, %v2516
    %2531 = vst.msk [vmem:[#allocation13 + $0x7] sm:$0x1] %vm1981, %v2518
    %2532 = vst.msk [vmem:[#allocation13 + $0x9] sm:$0x1] %vm1981, %v2501
    %2533 = vst.msk [vmem:[#allocation13 + $0xb] sm:$0x1] %vm1981, %v2515
    %2534 = vst.msk [vmem:[#allocation13 + $0xd] sm:$0x1] %vm1981, %v2517
    %2535 = vst.msk [vmem:[#allocation13 + $0xf] sm:$0x1] %vm1981, %v2519
    // Predicated region
    $region70: #{tpu_custom_call.1} parent=1 // pred_check
      _
    $region71: #{tpu_custom_call.1} parent=1 // pred_check_branch
      %2537 = sbr.rel (0) target = $region73
    $region72: #{tpu_custom_call.1} parent=1 // pred_region
      %s2539 = ssub.s32 256, 256
      %2540 = vsyncadd [#allocation4], %s2539
      %s2541 = sshll.u32 [#allocation12], 4
      %s2542 = int_to_ptr.vmem [resolvable:$true] %s2541
      %2547 = dma.vmem_to_hbm [thread:$0]  %s2542, 256, %s12, [#allocation4], 32, 32, 2
    $region73: #{tpu_custom_call.1} parent=1 // pred_fallthru
      _
    // Predicated region
    $region74: #{tpu_custom_call.1} parent=1 // pred_check
      _
    $region75: #{tpu_custom_call.1} parent=1 // pred_check_branch
      %2549 = sbr.rel (0) target = $region77
    $region76: #{tpu_custom_call.1} parent=1 // pred_region
      %s2551 = ssub.s32 256, 256
      %2552 = vsyncadd [#allocation14], %s2551
      %s2553 = sshll.u32 [#allocation13], 4
      %s2554 = int_to_ptr.vmem [resolvable:$true] %s2553
      %2559 = dma.vmem_to_hbm [thread:$0]  %s2554, 256, %s13, [#allocation14], 32, 32, 2
    $region77: #{tpu_custom_call.1} parent=1 // pred_fallthru
      _
    // Predicated region
    $region78: #{tpu_custom_call.1} parent=1 // pred_check
      _
    $region79: #{tpu_custom_call.1} parent=1 // pred_check_branch
      %2561 = sbr.rel (0) target = $region81
    $region80: #{tpu_custom_call.1} parent=1 // pred_region
      %s2563 = ssub.s32 32, 32
      %2564 = vsyncadd [#allocation14], %s2563
      %s2566 = sshll.u32 [#allocation15], 4
      %s2567 = int_to_ptr.vmem [resolvable:$true] %s2566
      %2569 = dma.vmem_to_hbm [thread:$0]  %s2567, 32, %s14, [#allocation14]
    $region81: #{tpu_custom_call.1} parent=1 // pred_fallthru
      _
    // Predicated region
    $region82: #{tpu_custom_call.1} parent=1 // pred_check
      _
    $region83: #{tpu_custom_call.1} parent=1 // pred_check_branch
      %2571 = sbr.rel (0) target = $region85
    $region84: #{tpu_custom_call.1} parent=1 // pred_region
      %s2573 = ssub.s32 32, 32
      %2574 = vsyncadd [#allocation17], %s2573
      %s2576 = sshll.u32 [#allocation16], 4
      %s2577 = int_to_ptr.vmem [resolvable:$true] %s2576
      %2579 = dma.vmem_to_hbm [thread:$0]  %s2577, 32, %s15, [#allocation17]
    $region85: #{tpu_custom_call.1} parent=1 // pred_fallthru
      _
    // Predicated region
    $region86: #{tpu_custom_call.1} parent=1 // pred_check
      _
    $region87: #{tpu_custom_call.1} parent=1 // pred_check_branch
      %2581 = sbr.rel (0) target = $region89
    $region88: #{tpu_custom_call.1} parent=1 // pred_region
      %2582 = dma.done [#allocation4], 256
    $region89: #{tpu_custom_call.1} parent=1 // pred_fallthru
      _
    // Predicated region
    $region90: #{tpu_custom_call.1} parent=1 // pred_check
      _
    $region91: #{tpu_custom_call.1} parent=1 // pred_check_branch
      %2584 = sbr.rel (0) target = $region93
    $region92: #{tpu_custom_call.1} parent=1 // pred_region
      %2585 = dma.done [#allocation14], 256
    $region93: #{tpu_custom_call.1} parent=1 // pred_fallthru
      _
    // Predicated region
    $region94: #{tpu_custom_call.1} parent=1 // pred_check
      _
    $region95: #{tpu_custom_call.1} parent=1 // pred_check_branch
      %2587 = sbr.rel (0) target = $region97
    $region96: #{tpu_custom_call.1} parent=1 // pred_region
      %2588 = dma.done [#allocation14], 32
    $region97: #{tpu_custom_call.1} parent=1 // pred_fallthru
      _
    // Predicated region
    $region98: #{tpu_custom_call.1} parent=1 // pred_check
      _
    $region99: #{tpu_custom_call.1} parent=1 // pred_check_branch
      %2590 = sbr.rel (0) target = $region101
    $region100: #{tpu_custom_call.1} parent=1 // pred_region
      %2591 = dma.done [#allocation17], 32
    $region101: #{tpu_custom_call.1} parent=1 // pred_fallthru
      _
    %2592 = vsyncpa [#allocation3], 1
    %2593 = vsyncpa [#allocation8], 1
    %2594 = vsyncpa [#allocation11], 1
    %2595 = vsyncpa [#allocation4], 1
    %2596 = vsyncpa [#allocation14], 1
    %2597 = vsyncpa [#allocation17], 1
    %2598 = vsyncpa [#allocation5], 1

</llo_original>
